<compile_context>
chip_gen: v6e
topology: v6e:2x2x1
jax: 0.10.0
libtpu: 0.0.40
codegen_flags: <defaults>
</compile_context>

<pallas_src>
import functools

import jax
import jax.numpy as jnp
from jax.experimental import pallas as pl
from jax.experimental.pallas import tpu as pltpu


_PARALLEL = pltpu.CompilerParams(dimension_semantics=("parallel",))


# ----------------------------- Pallas kernels -----------------------------

def _layernorm(x, g, b):
    # LayerNorm over last dim, eps = 1e-5 (PyTorch default), f32 math.
    mu = jnp.mean(x, axis=-1, keepdims=True)
    xc = x - mu
    var = jnp.mean(xc * xc, axis=-1, keepdims=True)
    return xc * jax.lax.rsqrt(var + 1e-5) * g + b


def _attn_block_kernel(x_ref, pos_ref, bias_ref, wqk_ref, bqk_ref, wv_ref,
                       bv_ref, wo_ref, bo_ref, g_ref, b_ref, o_ref,
                       *, nhead, head_dim):
    """One grid step == one batch element.  Fully fused attention block:
    QKV projection -> per-head softmax attention -> out-proj -> +res -> LN."""
    D = nhead * head_dim
    x = x_ref[0]                                                  # (S, D) f32
    xpe = (x + pos_ref[0]).astype(jnp.bfloat16)
    # Q/K use (src + pos), V uses src.  Wq/bq already pre-scaled by 1/sqrt(hd).
    qk = jnp.dot(xpe, wqk_ref[...],
                 preferred_element_type=jnp.float32) + bqk_ref[...]   # (S, 2D)
    v_all = jnp.dot(x.astype(jnp.bfloat16), wv_ref[...],
                    preferred_element_type=jnp.float32) + bv_ref[...]  # (S, D)
    bias = bias_ref[0]                                             # (1, S)

    outs = []
    for h in range(nhead):                    # static loop, nhead small
        lo, hi = h * head_dim, (h + 1) * head_dim
        q = qk[:, lo:hi].astype(jnp.bfloat16)
        k = qk[:, D + lo:D + hi].astype(jnp.bfloat16)
        v = v_all[:, lo:hi].astype(jnp.bfloat16)
        s = jax.lax.dot_general(q, k, (((1,), (1,)), ((), ())),
                                preferred_element_type=jnp.float32)  # (S, S)
        s = s + bias
        m = jnp.max(s, axis=-1, keepdims=True)
        p = jnp.exp(s - m)
        p = p * pl.reciprocal(jnp.sum(p, axis=-1, keepdims=True), approx=True)
        outs.append(jnp.dot(p.astype(jnp.bfloat16), v,
                            preferred_element_type=jnp.float32))     # (S, hd)
    attn = jnp.concatenate(outs, axis=-1)     # heads folded into lane dim

    y = jnp.dot(attn.astype(jnp.bfloat16), wo_ref[...],
                preferred_element_type=jnp.float32) + bo_ref[...]
    o_ref[0] = _layernorm(x + y, g_ref[...], b_ref[...])


def _ffn_ln_kernel(x_ref, w1_ref, b1_ref, w2_ref, b2_ref, g_ref, b_ref, o_ref):
    # linear1 -> relu -> linear2 -> residual add -> LayerNorm, fused.
    x = x_ref[...]
    h = jnp.dot(x.astype(jnp.bfloat16), w1_ref[...],
                preferred_element_type=jnp.float32) + b1_ref[...]
    h = jnp.maximum(h, 0.0)
    y = jnp.dot(h.astype(jnp.bfloat16), w2_ref[...],
                preferred_element_type=jnp.float32) + b2_ref[...]
    o_ref[...] = _layernorm(x + y, g_ref[...], b_ref[...])


def _ln_kernel(x_ref, g_ref, b_ref, o_ref):
    o_ref[...] = _layernorm(x_ref[...], g_ref[...], b_ref[...])


# ----------------------------- Pallas wrappers -----------------------------

def _row_block(n, max_rows=512):
    """Largest divisor of n that is a multiple of 8 and <= max_rows (else n)."""
    if n % 8 != 0:
        return n
    best = 8
    for cand in range(8, min(n, max_rows) + 1, 8):
        if n % cand == 0:
            best = cand
    return best


def attn_block(x, pos, bias, lp, nhead):
    """Fused attention block. x/pos: (B, S, D), bias: (B, 1, S) -> (B, S, D)."""
    B, S, D = x.shape
    kern = functools.partial(_attn_block_kernel, nhead=nhead,
                             head_dim=D // nhead)
    return pl.pallas_call(
        kern,
        out_shape=jax.ShapeDtypeStruct((B, S, D), jnp.float32),
        grid=(B,),
        in_specs=[pl.BlockSpec((1, S, D), lambda b: (b, 0, 0)),
                  pl.BlockSpec((1, S, D), lambda b: (b, 0, 0)),
                  pl.BlockSpec((1, 1, S), lambda b: (b, 0, 0)),
                  pl.BlockSpec((D, 2 * D), lambda b: (0, 0)),
                  pl.BlockSpec((1, 2 * D), lambda b: (0, 0)),
                  pl.BlockSpec((D, D), lambda b: (0, 0)),
                  pl.BlockSpec((1, D), lambda b: (0, 0)),
                  pl.BlockSpec((D, D), lambda b: (0, 0)),
                  pl.BlockSpec((1, D), lambda b: (0, 0)),
                  pl.BlockSpec((1, D), lambda b: (0, 0)),
                  pl.BlockSpec((1, D), lambda b: (0, 0))],
        out_specs=pl.BlockSpec((1, S, D), lambda b: (b, 0, 0)),
        compiler_params=_PARALLEL,
    )(x, pos, bias, lp["wqk"], lp["bqk"], lp["wv"], lp["bv"],
      lp["wo"], lp["bo"], lp["g1"], lp["bn1"])


def ffn_ln(x2d, lp):
    """linear2(relu(linear1(x))) + residual + LayerNorm.  (N, D) -> (N, D)."""
    N, D = x2d.shape
    F = lp["w1"].shape[1]
    bn = _row_block(N)
    return pl.pallas_call(
        _ffn_ln_kernel,
        out_shape=jax.ShapeDtypeStruct((N, D), jnp.float32),
        grid=(N // bn,),
        in_specs=[pl.BlockSpec((bn, D), lambda i: (i, 0)),
                  pl.BlockSpec((D, F), lambda i: (0, 0)),
                  pl.BlockSpec((1, F), lambda i: (0, 0)),
                  pl.BlockSpec((F, D), lambda i: (0, 0)),
                  pl.BlockSpec((1, D), lambda i: (0, 0)),
                  pl.BlockSpec((1, D), lambda i: (0, 0)),
                  pl.BlockSpec((1, D), lambda i: (0, 0))],
        out_specs=pl.BlockSpec((bn, D), lambda i: (i, 0)),
        compiler_params=_PARALLEL,
    )(x2d, lp["w1"], lp["b1"], lp["w2"], lp["b2"], lp["g2"], lp["bn2"])


def layernorm_rows(x2d, g, b):
    N, D = x2d.shape
    bn = _row_block(N)
    return pl.pallas_call(
        _ln_kernel,
        out_shape=jax.ShapeDtypeStruct((N, D), jnp.float32),
        grid=(N // bn,),
        in_specs=[pl.BlockSpec((bn, D), lambda i: (i, 0)),
                  pl.BlockSpec((1, D), lambda i: (0, 0)),
                  pl.BlockSpec((1, D), lambda i: (0, 0))],
        out_specs=pl.BlockSpec((bn, D), lambda i: (i, 0)),
        compiler_params=_PARALLEL,
    )(x2d, g, b)


# ----------------------------- Encoder forward -----------------------------

def encoder_layer_fwd(x, pos, bias, lp, nhead):
    """One DETR TransformerEncoderLayer (forward_post). x/pos: (B, S, D)."""
    B, S, D = x.shape
    x = attn_block(x, pos, bias, lp, nhead)          # QKV + MHA + out-proj + res + norm1
    x2 = ffn_ln(x.reshape(B * S, D), lp)             # FFN + res + norm2
    return x2.reshape(B, S, D)


def transformer_encoder_forward(params, src, mask=None,
                                src_key_padding_mask=None, pos=None, *, nhead):
    """Matches TransformerEncoder.forward: src (S, B, D) -> output (S, B, D)."""
    # TODO(synk): src_mask (attn_mask) not supported; DETR encoder always passes None.
    assert mask is None
    S, B, D = src.shape
    x = jnp.transpose(src, (1, 0, 2))                                # (B, S, D)
    p = (jnp.transpose(pos, (1, 0, 2)) if pos is not None
         else jnp.zeros_like(x))
    if src_key_padding_mask is not None:
        # finite large-negative bias instead of -inf (avoids NaN on fully-masked rows)
        bias = jnp.where(src_key_padding_mask, -1e30, 0.0).astype(jnp.float32)
        bias = bias[:, None, :]                                      # (B, 1, S)
    else:
        bias = jnp.zeros((B, 1, S), jnp.float32)

    for lp in params["layers"]:
        x = encoder_layer_fwd(x, p, bias, lp, nhead)

    if params.get("norm") is not None:
        g, b = params["norm"]
        x = layernorm_rows(x.reshape(B * S, D), g, b).reshape(B, S, D)

    return jnp.transpose(x, (1, 0, 2))                               # (S, B, D)


# ----------------------------- Parameters -----------------------------

def _xavier_uniform(key, shape):
    fan_out, fan_in = shape[0], shape[1]
    a = (6.0 / (fan_in + fan_out)) ** 0.5
    return jax.random.uniform(key, shape, jnp.float32, -a, a)


def init_encoder_params(key, d_model, dim_feedforward, num_layers):
    """PyTorch-layout parameters (weights stored (out, in))."""
    layers = []
    for kl in jax.random.split(key, num_layers):
        k1, k2, k3, k4 = jax.random.split(kl, 4)
        layers.append(dict(
            in_proj_weight=_xavier_uniform(k1, (3 * d_model, d_model)),
            in_proj_bias=jnp.zeros((3 * d_model,), jnp.float32),
            out_proj_weight=_xavier_uniform(k2, (d_model, d_model)),
            out_proj_bias=jnp.zeros((d_model,), jnp.float32),
            linear1_weight=_xavier_uniform(k3, (dim_feedforward, d_model)),
            linear1_bias=jnp.zeros((dim_feedforward,), jnp.float32),
            linear2_weight=_xavier_uniform(k4, (d_model, dim_feedforward)),
            linear2_bias=jnp.zeros((d_model,), jnp.float32),
            norm1_weight=jnp.ones((d_model,), jnp.float32),
            norm1_bias=jnp.zeros((d_model,), jnp.float32),
            norm2_weight=jnp.ones((d_model,), jnp.float32),
            norm2_bias=jnp.zeros((d_model,), jnp.float32),
        ))
    return dict(layers=layers)


def prepare_encoder_params(params, nhead):
    """One-time conversion to kernel layout: (Din, Dout) bf16 weights,
    1/sqrt(head_dim) folded into Wq/bq, biases and LN params as (1, D) f32."""
    prepared = []
    for p in params["layers"]:
        D = p["norm1_weight"].shape[0]
        scale = float(D // nhead) ** -0.5
        wq, wk, wv = jnp.split(p["in_proj_weight"], 3, axis=0)
        bq, bk, bv = jnp.split(p["in_proj_bias"], 3, axis=0)
        prepared.append(dict(
            wqk=jnp.concatenate([wq.T * scale, wk.T], axis=1).astype(jnp.bfloat16),
            bqk=jnp.concatenate([bq * scale, bk])[None, :],
            wv=wv.T.astype(jnp.bfloat16),
            bv=bv[None, :],
            wo=p["out_proj_weight"].T.astype(jnp.bfloat16),
            bo=p["out_proj_bias"][None, :],
            w1=p["linear1_weight"].T.astype(jnp.bfloat16),
            b1=p["linear1_bias"][None, :],
            w2=p["linear2_weight"].T.astype(jnp.bfloat16),
            b2=p["linear2_bias"][None, :],
            g1=p["norm1_weight"][None, :], bn1=p["norm1_bias"][None, :],
            g2=p["norm2_weight"][None, :], bn2=p["norm2_bias"][None, :],
        ))
    # DETR: encoder norm is None when normalize_before=False
    return dict(layers=prepared, norm=None)


# ----------------------------- Pure-JAX reference (f32) -----------------------------

def _ln_ref(x, g, b, eps=1e-5):
    mu = jnp.mean(x, axis=-1, keepdims=True)
    var = jnp.mean((x - mu) ** 2, axis=-1, keepdims=True)
    return (x - mu) / jnp.sqrt(var + eps) * g + b


def reference_forward(torch_params, src, key_padding_mask, pos, nhead):
    S, B, D = src.shape
    hd = D // nhead
    x = src
    bias = jnp.where(key_padding_mask, -1e30, 0.0)                  # (B, S)
    for p in torch_params["layers"]:
        q_in = x + pos
        Wq, Wk, Wv = jnp.split(p["in_proj_weight"], 3, axis=0)
        bq, bk, bv = jnp.split(p["in_proj_bias"], 3, axis=0)
        q = q_in @ Wq.T + bq
        k = q_in @ Wk.T + bk
        v = x @ Wv.T + bv

        def split_heads(t):
            return jnp.transpose(t.reshape(S, B, nhead, hd), (1, 2, 0, 3))

        qh, kh, vh = split_heads(q), split_heads(k), split_heads(v)
        scores = jnp.einsum('bhqd,bhkd->bhqk', qh, kh) / jnp.sqrt(hd)
        scores = scores + bias[:, None, None, :]
        pattn = jax.nn.softmax(scores, axis=-1)
        oh = jnp.einsum('bhqk,bhkd->bhqd', pattn, vh)
        o = jnp.transpose(oh, (2, 0, 1, 3)).reshape(S, B, D)
        attn = o @ p["out_proj_weight"].T + p["out_proj_bias"]
        x = _ln_ref(x + attn, p["norm1_weight"], p["norm1_bias"])
        h = jax.nn.relu(x @ p["linear1_weight"].T + p["linear1_bias"])
        y = h @ p["linear2_weight"].T + p["linear2_bias"]
        x = _ln_ref(x + y, p["norm2_weight"], p["norm2_bias"])
    return x


# ----------------------------- Main -----------------------------

if __name__ == "__main__":
    # small-but-representative shapes (e.g. a 4x4 DETR feature map flattened)
    d_model, nhead, dim_feedforward, num_layers = 32, 4, 64, 2
    bs, seq = 2, 16

    key = jax.random.PRNGKey(0)
    kp, k1, k2 = jax.random.split(key, 3)

    torch_params = init_encoder_params(kp, d_model, dim_feedforward, num_layers)
    params = prepare_encoder_params(torch_params, nhead)   # pre-transpose / bf16 once

    src = jax.random.normal(k1, (seq, bs, d_model), jnp.float32)
    pos = jax.random.normal(k2, (seq, bs, d_model), jnp.float32)
    # pad the last 3 positions of batch element 1 to exercise the mask path
    key_padding_mask = jnp.zeros((bs, seq), dtype=bool).at[1, -3:].set(True)

    fwd = jax.jit(functools.partial(transformer_encoder_forward, nhead=nhead))
    out = fwd(params, src, None, key_padding_mask, pos)
    jax.block_until_ready(out)

    assert out.shape == (seq, bs, d_model), out.shape
    assert bool(jnp.all(jnp.isfinite(out)))

    # numerical check against a pure-JAX f32 reference (bf16 matmuls => loose tol)
    ref = reference_forward(torch_params, src, key_padding_mask, pos, nhead)
    max_err = float(jnp.max(jnp.abs(out - ref)))
    assert max_err < 1e-1, f"max abs err vs reference: {max_err}"
    # TODO(synk): dropout layers are identity (eval mode); torch training-mode RNG dropout not reproduced.
    print("KERNEL_OK")
</pallas_src>

<mosaic_0001>
module attributes {stable_mosaic.version = 11 : i64} {
  func.func @_attn_block_kernel(%arg0: i32, %arg1: memref<1x16x32xf32, #tpu.memory_space<vmem>>, %arg2: memref<1x16x32xf32, #tpu.memory_space<vmem>>, %arg3: memref<1x1x16xf32, #tpu.memory_space<vmem>>, %arg4: memref<32x64xbf16, #tpu.memory_space<vmem>>, %arg5: memref<1x64xf32, #tpu.memory_space<vmem>>, %arg6: memref<32x32xbf16, #tpu.memory_space<vmem>>, %arg7: memref<1x32xf32, #tpu.memory_space<vmem>>, %arg8: memref<32x32xbf16, #tpu.memory_space<vmem>>, %arg9: memref<1x32xf32, #tpu.memory_space<vmem>>, %arg10: memref<1x32xf32, #tpu.memory_space<vmem>>, %arg11: memref<1x32xf32, #tpu.memory_space<vmem>>, %arg12: memref<1x16x32xf32, #tpu.memory_space<vmem>>) attributes {dimension_semantics = [#tpu.dimension_semantics<parallel>], iteration_bounds = array<i64: 2>, scalar_prefetch = 0 : i64, scratch_operands = 0 : i64, tpu.core_type = #tpu.core_type<tc>, window_params = [{transform_indices = @transform_0, window_bounds = array<i64: 1, 16, 32>}, {transform_indices = @transform_1, window_bounds = array<i64: 1, 16, 32>}, {transform_indices = @transform_2, window_bounds = array<i64: 1, 1, 16>}, {pipeline_mode = #tpu.pipeline_mode<synchronous>, transform_indices = @transform_3, window_bounds = array<i64: 32, 64>}, {pipeline_mode = #tpu.pipeline_mode<synchronous>, transform_indices = @transform_4, window_bounds = array<i64: 1, 64>}, {pipeline_mode = #tpu.pipeline_mode<synchronous>, transform_indices = @transform_5, window_bounds = array<i64: 32, 32>}, {pipeline_mode = #tpu.pipeline_mode<synchronous>, transform_indices = @transform_6, window_bounds = array<i64: 1, 32>}, {pipeline_mode = #tpu.pipeline_mode<synchronous>, transform_indices = @transform_7, window_bounds = array<i64: 32, 32>}, {pipeline_mode = #tpu.pipeline_mode<synchronous>, transform_indices = @transform_8, window_bounds = array<i64: 1, 32>}, {pipeline_mode = #tpu.pipeline_mode<synchronous>, transform_indices = @transform_9, window_bounds = array<i64: 1, 32>}, {pipeline_mode = #tpu.pipeline_mode<synchronous>, transform_indices = @transform_10, window_bounds = array<i64: 1, 32>}, {transform_indices = @transform_11, window_bounds = array<i64: 1, 16, 32>}]} {
    %c0 = arith.constant 0 : index
    %c0_0 = arith.constant 0 : index
    %c0_1 = arith.constant 0 : index
    %0 = vector.load %arg1[%c0, %c0_0, %c0_1] : memref<1x16x32xf32, #tpu.memory_space<vmem>>, vector<1x16x32xf32>
    %1 = vector.shape_cast %0 : vector<1x16x32xf32> to vector<16x32xf32>
    %c0_2 = arith.constant 0 : index
    %c0_3 = arith.constant 0 : index
    %c0_4 = arith.constant 0 : index
    %2 = vector.load %arg2[%c0_2, %c0_3, %c0_4] : memref<1x16x32xf32, #tpu.memory_space<vmem>>, vector<1x16x32xf32>
    %3 = vector.shape_cast %2 : vector<1x16x32xf32> to vector<16x32xf32>
    %4 = arith.addf %1, %3 : vector<16x32xf32>
    %5 = arith.truncf %4 : vector<16x32xf32> to vector<16x32xbf16>
    %c0_5 = arith.constant 0 : index
    %c0_6 = arith.constant 0 : index
    %6 = vector.load %arg4[%c0_5, %c0_6] : memref<32x64xbf16, #tpu.memory_space<vmem>>, vector<32x64xbf16>
    %cst = arith.constant dense<0.000000e+00> : vector<16x64xf32>
    %7 = tpu.matmul %5, %6, %cst {dimension_numbers = #tpu.dot_dimension_numbers<[1], [0], [0], [1], [0, 0, 1, 1], [], []>} : vector<16x32xbf16>, vector<32x64xbf16>, vector<16x64xf32> -> vector<16x64xf32>
    %c0_7 = arith.constant 0 : index
    %c0_8 = arith.constant 0 : index
    %8 = vector.load %arg5[%c0_7, %c0_8] : memref<1x64xf32, #tpu.memory_space<vmem>>, vector<1x64xf32>
    %9 = vector.broadcast %8 : vector<1x64xf32> to vector<16x64xf32>
    %10 = arith.addf %7, %9 : vector<16x64xf32>
    %11 = arith.truncf %1 : vector<16x32xf32> to vector<16x32xbf16>
    %c0_9 = arith.constant 0 : index
    %c0_10 = arith.constant 0 : index
    %12 = vector.load %arg6[%c0_9, %c0_10] : memref<32x32xbf16, #tpu.memory_space<vmem>>, vector<32x32xbf16>
    %cst_11 = arith.constant dense<0.000000e+00> : vector<16x32xf32>
    %13 = tpu.matmul %11, %12, %cst_11 {dimension_numbers = #tpu.dot_dimension_numbers<[1], [0], [0], [1], [0, 0, 1, 1], [], []>} : vector<16x32xbf16>, vector<32x32xbf16>, vector<16x32xf32> -> vector<16x32xf32>
    %c0_12 = arith.constant 0 : index
    %c0_13 = arith.constant 0 : index
    %14 = vector.load %arg7[%c0_12, %c0_13] : memref<1x32xf32, #tpu.memory_space<vmem>>, vector<1x32xf32>
    %15 = vector.broadcast %14 : vector<1x32xf32> to vector<16x32xf32>
    %16 = arith.addf %13, %15 : vector<16x32xf32>
    %c0_14 = arith.constant 0 : index
    %c0_15 = arith.constant 0 : index
    %c0_16 = arith.constant 0 : index
    %17 = vector.load %arg3[%c0_14, %c0_15, %c0_16] : memref<1x1x16xf32, #tpu.memory_space<vmem>>, vector<1x1x16xf32>
    %18 = vector.shape_cast %17 : vector<1x1x16xf32> to vector<1x16xf32>
    %19 = vector.extract_strided_slice %10 {offsets = [0, 0], sizes = [16, 8], strides = [1, 1]} : vector<16x64xf32> to vector<16x8xf32>
    %20 = arith.truncf %19 : vector<16x8xf32> to vector<16x8xbf16>
    %21 = vector.extract_strided_slice %10 {offsets = [0, 32], sizes = [16, 8], strides = [1, 1]} : vector<16x64xf32> to vector<16x8xf32>
    %22 = arith.truncf %21 : vector<16x8xf32> to vector<16x8xbf16>
    %23 = vector.extract_strided_slice %16 {offsets = [0, 0], sizes = [16, 8], strides = [1, 1]} : vector<16x32xf32> to vector<16x8xf32>
    %24 = arith.truncf %23 : vector<16x8xf32> to vector<16x8xbf16>
    %cst_17 = arith.constant dense<0.000000e+00> : vector<16x16xf32>
    %25 = tpu.matmul %20, %22, %cst_17 {dimension_numbers = #tpu.dot_dimension_numbers<[1], [1], [0], [0], [0, 0, 1, 0], [], []>} : vector<16x8xbf16>, vector<16x8xbf16>, vector<16x16xf32> -> vector<16x16xf32>
    %26 = vector.broadcast %18 : vector<1x16xf32> to vector<16x16xf32>
    %27 = arith.addf %25, %26 : vector<16x16xf32>
    %cst_18 = arith.constant dense<0xFF800000> : vector<16xf32>
    %28 = vector.multi_reduction <maximumf>, %27, %cst_18 [1] : vector<16x16xf32> to vector<16xf32>
    %29 = vector.shape_cast %28 : vector<16xf32> to vector<16x1xf32>
    %30 = vector.broadcast %29 : vector<16x1xf32> to vector<16x16xf32>
    %31 = arith.subf %27, %30 : vector<16x16xf32>
    %32 = math.exp %31 : vector<16x16xf32>
    %cst_19 = arith.constant dense<0.000000e+00> : vector<16xf32>
    %33 = vector.multi_reduction <add>, %32, %cst_19 [1] : vector<16x16xf32> to vector<16xf32>
    %34 = vector.shape_cast %33 : vector<16xf32> to vector<16x1xf32>
    %35 = tpu.reciprocal %34 {approx = true} : vector<16x1xf32> -> vector<16x1xf32>
    %36 = vector.broadcast %35 : vector<16x1xf32> to vector<16x16xf32>
    %37 = arith.mulf %32, %36 : vector<16x16xf32>
    %38 = arith.truncf %37 : vector<16x16xf32> to vector<16x16xbf16>
    %cst_20 = arith.constant dense<0.000000e+00> : vector<16x8xf32>
    %39 = tpu.matmul %38, %24, %cst_20 {dimension_numbers = #tpu.dot_dimension_numbers<[1], [0], [0], [1], [0, 0, 1, 1], [], []>} : vector<16x16xbf16>, vector<16x8xbf16>, vector<16x8xf32> -> vector<16x8xf32>
    %40 = vector.extract_strided_slice %10 {offsets = [0, 8], sizes = [16, 8], strides = [1, 1]} : vector<16x64xf32> to vector<16x8xf32>
    %41 = arith.truncf %40 : vector<16x8xf32> to vector<16x8xbf16>
    %42 = vector.extract_strided_slice %10 {offsets = [0, 40], sizes = [16, 8], strides = [1, 1]} : vector<16x64xf32> to vector<16x8xf32>
    %43 = arith.truncf %42 : vector<16x8xf32> to vector<16x8xbf16>
    %44 = vector.extract_strided_slice %16 {offsets = [0, 8], sizes = [16, 8], strides = [1, 1]} : vector<16x32xf32> to vector<16x8xf32>
    %45 = arith.truncf %44 : vector<16x8xf32> to vector<16x8xbf16>
    %cst_21 = arith.constant dense<0.000000e+00> : vector<16x16xf32>
    %46 = tpu.matmul %41, %43, %cst_21 {dimension_numbers = #tpu.dot_dimension_numbers<[1], [1], [0], [0], [0, 0, 1, 0], [], []>} : vector<16x8xbf16>, vector<16x8xbf16>, vector<16x16xf32> -> vector<16x16xf32>
    %47 = vector.broadcast %18 : vector<1x16xf32> to vector<16x16xf32>
    %48 = arith.addf %46, %47 : vector<16x16xf32>
    %cst_22 = arith.constant dense<0xFF800000> : vector<16xf32>
    %49 = vector.multi_reduction <maximumf>, %48, %cst_22 [1] : vector<16x16xf32> to vector<16xf32>
    %50 = vector.shape_cast %49 : vector<16xf32> to vector<16x1xf32>
    %51 = vector.broadcast %50 : vector<16x1xf32> to vector<16x16xf32>
    %52 = arith.subf %48, %51 : vector<16x16xf32>
    %53 = math.exp %52 : vector<16x16xf32>
    %cst_23 = arith.constant dense<0.000000e+00> : vector<16xf32>
    %54 = vector.multi_reduction <add>, %53, %cst_23 [1] : vector<16x16xf32> to vector<16xf32>
    %55 = vector.shape_cast %54 : vector<16xf32> to vector<16x1xf32>
    %56 = tpu.reciprocal %55 {approx = true} : vector<16x1xf32> -> vector<16x1xf32>
    %57 = vector.broadcast %56 : vector<16x1xf32> to vector<16x16xf32>
    %58 = arith.mulf %53, %57 : vector<16x16xf32>
    %59 = arith.truncf %58 : vector<16x16xf32> to vector<16x16xbf16>
    %cst_24 = arith.constant dense<0.000000e+00> : vector<16x8xf32>
    %60 = tpu.matmul %59, %45, %cst_24 {dimension_numbers = #tpu.dot_dimension_numbers<[1], [0], [0], [1], [0, 0, 1, 1], [], []>} : vector<16x16xbf16>, vector<16x8xbf16>, vector<16x8xf32> -> vector<16x8xf32>
    %61 = vector.extract_strided_slice %10 {offsets = [0, 16], sizes = [16, 8], strides = [1, 1]} : vector<16x64xf32> to vector<16x8xf32>
    %62 = arith.truncf %61 : vector<16x8xf32> to vector<16x8xbf16>
    %63 = vector.extract_strided_slice %10 {offsets = [0, 48], sizes = [16, 8], strides = [1, 1]} : vector<16x64xf32> to vector<16x8xf32>
    %64 = arith.truncf %63 : vector<16x8xf32> to vector<16x8xbf16>
    %65 = vector.extract_strided_slice %16 {offsets = [0, 16], sizes = [16, 8], strides = [1, 1]} : vector<16x32xf32> to vector<16x8xf32>
    %66 = arith.truncf %65 : vector<16x8xf32> to vector<16x8xbf16>
    %cst_25 = arith.constant dense<0.000000e+00> : vector<16x16xf32>
    %67 = tpu.matmul %62, %64, %cst_25 {dimension_numbers = #tpu.dot_dimension_numbers<[1], [1], [0], [0], [0, 0, 1, 0], [], []>} : vector<16x8xbf16>, vector<16x8xbf16>, vector<16x16xf32> -> vector<16x16xf32>
    %68 = vector.broadcast %18 : vector<1x16xf32> to vector<16x16xf32>
    %69 = arith.addf %67, %68 : vector<16x16xf32>
    %cst_26 = arith.constant dense<0xFF800000> : vector<16xf32>
    %70 = vector.multi_reduction <maximumf>, %69, %cst_26 [1] : vector<16x16xf32> to vector<16xf32>
    %71 = vector.shape_cast %70 : vector<16xf32> to vector<16x1xf32>
    %72 = vector.broadcast %71 : vector<16x1xf32> to vector<16x16xf32>
    %73 = arith.subf %69, %72 : vector<16x16xf32>
    %74 = math.exp %73 : vector<16x16xf32>
    %cst_27 = arith.constant dense<0.000000e+00> : vector<16xf32>
    %75 = vector.multi_reduction <add>, %74, %cst_27 [1] : vector<16x16xf32> to vector<16xf32>
    %76 = vector.shape_cast %75 : vector<16xf32> to vector<16x1xf32>
    %77 = tpu.reciprocal %76 {approx = true} : vector<16x1xf32> -> vector<16x1xf32>
    %78 = vector.broadcast %77 : vector<16x1xf32> to vector<16x16xf32>
    %79 = arith.mulf %74, %78 : vector<16x16xf32>
    %80 = arith.truncf %79 : vector<16x16xf32> to vector<16x16xbf16>
    %cst_28 = arith.constant dense<0.000000e+00> : vector<16x8xf32>
    %81 = tpu.matmul %80, %66, %cst_28 {dimension_numbers = #tpu.dot_dimension_numbers<[1], [0], [0], [1], [0, 0, 1, 1], [], []>} : vector<16x16xbf16>, vector<16x8xbf16>, vector<16x8xf32> -> vector<16x8xf32>
    %82 = vector.extract_strided_slice %10 {offsets = [0, 24], sizes = [16, 8], strides = [1, 1]} : vector<16x64xf32> to vector<16x8xf32>
    %83 = arith.truncf %82 : vector<16x8xf32> to vector<16x8xbf16>
    %84 = vector.extract_strided_slice %10 {offsets = [0, 56], sizes = [16, 8], strides = [1, 1]} : vector<16x64xf32> to vector<16x8xf32>
    %85 = arith.truncf %84 : vector<16x8xf32> to vector<16x8xbf16>
    %86 = vector.extract_strided_slice %16 {offsets = [0, 24], sizes = [16, 8], strides = [1, 1]} : vector<16x32xf32> to vector<16x8xf32>
    %87 = arith.truncf %86 : vector<16x8xf32> to vector<16x8xbf16>
    %cst_29 = arith.constant dense<0.000000e+00> : vector<16x16xf32>
    %88 = tpu.matmul %83, %85, %cst_29 {dimension_numbers = #tpu.dot_dimension_numbers<[1], [1], [0], [0], [0, 0, 1, 0], [], []>} : vector<16x8xbf16>, vector<16x8xbf16>, vector<16x16xf32> -> vector<16x16xf32>
    %89 = vector.broadcast %18 : vector<1x16xf32> to vector<16x16xf32>
    %90 = arith.addf %88, %89 : vector<16x16xf32>
    %cst_30 = arith.constant dense<0xFF800000> : vector<16xf32>
    %91 = vector.multi_reduction <maximumf>, %90, %cst_30 [1] : vector<16x16xf32> to vector<16xf32>
    %92 = vector.shape_cast %91 : vector<16xf32> to vector<16x1xf32>
    %93 = vector.broadcast %92 : vector<16x1xf32> to vector<16x16xf32>
    %94 = arith.subf %90, %93 : vector<16x16xf32>
    %95 = math.exp %94 : vector<16x16xf32>
    %cst_31 = arith.constant dense<0.000000e+00> : vector<16xf32>
    %96 = vector.multi_reduction <add>, %95, %cst_31 [1] : vector<16x16xf32> to vector<16xf32>
    %97 = vector.shape_cast %96 : vector<16xf32> to vector<16x1xf32>
    %98 = tpu.reciprocal %97 {approx = true} : vector<16x1xf32> -> vector<16x1xf32>
    %99 = vector.broadcast %98 : vector<16x1xf32> to vector<16x16xf32>
    %100 = arith.mulf %95, %99 : vector<16x16xf32>
    %101 = arith.truncf %100 : vector<16x16xf32> to vector<16x16xbf16>
    %cst_32 = arith.constant dense<0.000000e+00> : vector<16x8xf32>
    %102 = tpu.matmul %101, %87, %cst_32 {dimension_numbers = #tpu.dot_dimension_numbers<[1], [0], [0], [1], [0, 0, 1, 1], [], []>} : vector<16x16xbf16>, vector<16x8xbf16>, vector<16x8xf32> -> vector<16x8xf32>
    %103 = tpu.concatenate %39, %60, %81, %102 in 1 : vector<16x8xf32>, vector<16x8xf32>, vector<16x8xf32>, vector<16x8xf32> -> vector<16x32xf32>
    %104 = arith.truncf %103 : vector<16x32xf32> to vector<16x32xbf16>
    %c0_33 = arith.constant 0 : index
    %c0_34 = arith.constant 0 : index
    %105 = vector.load %arg8[%c0_33, %c0_34] : memref<32x32xbf16, #tpu.memory_space<vmem>>, vector<32x32xbf16>
    %cst_35 = arith.constant dense<0.000000e+00> : vector<16x32xf32>
    %106 = tpu.matmul %104, %105, %cst_35 {dimension_numbers = #tpu.dot_dimension_numbers<[1], [0], [0], [1], [0, 0, 1, 1], [], []>} : vector<16x32xbf16>, vector<32x32xbf16>, vector<16x32xf32> -> vector<16x32xf32>
    %c0_36 = arith.constant 0 : index
    %c0_37 = arith.constant 0 : index
    %107 = vector.load %arg9[%c0_36, %c0_37] : memref<1x32xf32, #tpu.memory_space<vmem>>, vector<1x32xf32>
    %108 = vector.broadcast %107 : vector<1x32xf32> to vector<16x32xf32>
    %109 = arith.addf %106, %108 : vector<16x32xf32>
    %110 = arith.addf %1, %109 : vector<16x32xf32>
    %c0_38 = arith.constant 0 : index
    %c0_39 = arith.constant 0 : index
    %111 = vector.load %arg10[%c0_38, %c0_39] : memref<1x32xf32, #tpu.memory_space<vmem>>, vector<1x32xf32>
    %c0_40 = arith.constant 0 : index
    %c0_41 = arith.constant 0 : index
    %112 = vector.load %arg11[%c0_40, %c0_41] : memref<1x32xf32, #tpu.memory_space<vmem>>, vector<1x32xf32>
    %cst_42 = arith.constant dense<0.000000e+00> : vector<16xf32>
    %113 = vector.multi_reduction <add>, %110, %cst_42 [1] : vector<16x32xf32> to vector<16xf32>
    %114 = vector.shape_cast %113 : vector<16xf32> to vector<16x1xf32>
    %cst_43 = arith.constant 3.200000e+01 : f32
    %115 = vector.broadcast %cst_43 : f32 to vector<16x1xf32>
    %116 = arith.divf %114, %115 : vector<16x1xf32>
    %117 = vector.broadcast %116 : vector<16x1xf32> to vector<16x32xf32>
    %118 = arith.subf %110, %117 : vector<16x32xf32>
    %119 = arith.mulf %118, %118 : vector<16x32xf32>
    %cst_44 = arith.constant dense<0.000000e+00> : vector<16xf32>
    %120 = vector.multi_reduction <add>, %119, %cst_44 [1] : vector<16x32xf32> to vector<16xf32>
    %121 = vector.shape_cast %120 : vector<16xf32> to vector<16x1xf32>
    %cst_45 = arith.constant 3.200000e+01 : f32
    %122 = vector.broadcast %cst_45 : f32 to vector<16x1xf32>
    %123 = arith.divf %121, %122 : vector<16x1xf32>
    %cst_46 = arith.constant 9.99999974E-6 : f32
    %124 = vector.broadcast %cst_46 : f32 to vector<16x1xf32>
    %125 = arith.addf %123, %124 : vector<16x1xf32>
    %126 = math.rsqrt %125 : vector<16x1xf32>
    %127 = vector.broadcast %126 : vector<16x1xf32> to vector<16x32xf32>
    %128 = arith.mulf %118, %127 : vector<16x32xf32>
    %129 = vector.broadcast %111 : vector<1x32xf32> to vector<16x32xf32>
    %130 = arith.mulf %128, %129 : vector<16x32xf32>
    %131 = vector.broadcast %112 : vector<1x32xf32> to vector<16x32xf32>
    %132 = arith.addf %130, %131 : vector<16x32xf32>
    %c0_47 = arith.constant 0 : index
    %c0_48 = arith.constant 0 : index
    %c0_49 = arith.constant 0 : index
    %133 = vector.load %arg12[%c0_47, %c0_48, %c0_49] : memref<1x16x32xf32, #tpu.memory_space<vmem>>, vector<1x16x32xf32>
    %134 = vector.shape_cast %133 : vector<1x16x32xf32> to vector<16x32xf32>
    %135 = vector.shape_cast %132 : vector<16x32xf32> to vector<1x16x32xf32>
    tpu.vector_store %arg12[%c0_47, %c0_48, %c0_49], %135 {strides = array<i32>} : memref<1x16x32xf32, #tpu.memory_space<vmem>>, vector<1x16x32xf32>,
    return
  }
  func.func @transform_0(%arg0: i32) -> (i32, i32, i32) {
    %c0_i32 = arith.constant 0 : i32
    %c0_i32_0 = arith.constant 0 : i32
    %c0_i32_1 = arith.constant 0 : i32
    return %arg0, %c0_i32, %c0_i32_0 : i32, i32, i32
  }
  func.func @transform_1(%arg0: i32) -> (i32, i32, i32) {
    %c0_i32 = arith.constant 0 : i32
    %c0_i32_0 = arith.constant 0 : i32
    %c0_i32_1 = arith.constant 0 : i32
    return %arg0, %c0_i32, %c0_i32_0 : i32, i32, i32
  }
  func.func @transform_2(%arg0: i32) -> (i32, i32, i32) {
    %c0_i32 = arith.constant 0 : i32
    %c0_i32_0 = arith.constant 0 : i32
    %c0_i32_1 = arith.constant 0 : i32
    return %arg0, %c0_i32, %c0_i32_0 : i32, i32, i32
  }
  func.func @transform_3(%arg0: i32) -> (i32, i32) {
    %c0_i32 = arith.constant 0 : i32
    %c0_i32_0 = arith.constant 0 : i32
    %c0_i32_1 = arith.constant 0 : i32
    return %c0_i32, %c0_i32_0 : i32, i32
  }
  func.func @transform_4(%arg0: i32) -> (i32, i32) {
    %c0_i32 = arith.constant 0 : i32
    %c0_i32_0 = arith.constant 0 : i32
    %c0_i32_1 = arith.constant 0 : i32
    return %c0_i32, %c0_i32_0 : i32, i32
  }
  func.func @transform_5(%arg0: i32) -> (i32, i32) {
    %c0_i32 = arith.constant 0 : i32
    %c0_i32_0 = arith.constant 0 : i32
    %c0_i32_1 = arith.constant 0 : i32
    return %c0_i32, %c0_i32_0 : i32, i32
  }
  func.func @transform_6(%arg0: i32) -> (i32, i32) {
    %c0_i32 = arith.constant 0 : i32
    %c0_i32_0 = arith.constant 0 : i32
    %c0_i32_1 = arith.constant 0 : i32
    return %c0_i32, %c0_i32_0 : i32, i32
  }
  func.func @transform_7(%arg0: i32) -> (i32, i32) {
    %c0_i32 = arith.constant 0 : i32
    %c0_i32_0 = arith.constant 0 : i32
    %c0_i32_1 = arith.constant 0 : i32
    return %c0_i32, %c0_i32_0 : i32, i32
  }
  func.func @transform_8(%arg0: i32) -> (i32, i32) {
    %c0_i32 = arith.constant 0 : i32
    %c0_i32_0 = arith.constant 0 : i32
    %c0_i32_1 = arith.constant 0 : i32
    return %c0_i32, %c0_i32_0 : i32, i32
  }
  func.func @transform_9(%arg0: i32) -> (i32, i32) {
    %c0_i32 = arith.constant 0 : i32
    %c0_i32_0 = arith.constant 0 : i32
    %c0_i32_1 = arith.constant 0 : i32
    return %c0_i32, %c0_i32_0 : i32, i32
  }
  func.func @transform_10(%arg0: i32) -> (i32, i32) {
    %c0_i32 = arith.constant 0 : i32
    %c0_i32_0 = arith.constant 0 : i32
    %c0_i32_1 = arith.constant 0 : i32
    return %c0_i32, %c0_i32_0 : i32, i32
  }
  func.func @transform_11(%arg0: i32) -> (i32, i32, i32) {
    %c0_i32 = arith.constant 0 : i32
    %c0_i32_0 = arith.constant 0 : i32
    %c0_i32_1 = arith.constant 0 : i32
    return %arg0, %c0_i32, %c0_i32_0 : i32, i32, i32
  }
}

module attributes {stable_mosaic.version = 11 : i64} {
  func.func @_ffn_ln_kernel(%arg0: i32, %arg1: memref<32x32xf32, #tpu.memory_space<vmem>>, %arg2: memref<32x64xbf16, #tpu.memory_space<vmem>>, %arg3: memref<1x64xf32, #tpu.memory_space<vmem>>, %arg4: memref<64x32xbf16, #tpu.memory_space<vmem>>, %arg5: memref<1x32xf32, #tpu.memory_space<vmem>>, %arg6: memref<1x32xf32, #tpu.memory_space<vmem>>, %arg7: memref<1x32xf32, #tpu.memory_space<vmem>>, %arg8: memref<32x32xf32, #tpu.memory_space<vmem>>) attributes {dimension_semantics = [#tpu.dimension_semantics<parallel>], iteration_bounds = array<i64: 1>, scalar_prefetch = 0 : i64, scratch_operands = 0 : i64, tpu.core_type = #tpu.core_type<tc>, window_params = [{transform_indices = @transform_0, window_bounds = array<i64: 32, 32>}, {pipeline_mode = #tpu.pipeline_mode<synchronous>, transform_indices = @transform_1, window_bounds = array<i64: 32, 64>}, {pipeline_mode = #tpu.pipeline_mode<synchronous>, transform_indices = @transform_2, window_bounds = array<i64: 1, 64>}, {pipeline_mode = #tpu.pipeline_mode<synchronous>, transform_indices = @transform_3, window_bounds = array<i64: 64, 32>}, {pipeline_mode = #tpu.pipeline_mode<synchronous>, transform_indices = @transform_4, window_bounds = array<i64: 1, 32>}, {pipeline_mode = #tpu.pipeline_mode<synchronous>, transform_indices = @transform_5, window_bounds = array<i64: 1, 32>}, {pipeline_mode = #tpu.pipeline_mode<synchronous>, transform_indices = @transform_6, window_bounds = array<i64: 1, 32>}, {transform_indices = @transform_7, window_bounds = array<i64: 32, 32>}]} {
    %c0 = arith.constant 0 : index
    %c0_0 = arith.constant 0 : index
    %0 = vector.load %arg1[%c0, %c0_0] : memref<32x32xf32, #tpu.memory_space<vmem>>, vector<32x32xf32>
    %1 = arith.truncf %0 : vector<32x32xf32> to vector<32x32xbf16>
    %c0_1 = arith.constant 0 : index
    %c0_2 = arith.constant 0 : index
    %2 = vector.load %arg2[%c0_1, %c0_2] : memref<32x64xbf16, #tpu.memory_space<vmem>>, vector<32x64xbf16>
    %cst = arith.constant dense<0.000000e+00> : vector<32x64xf32>
    %3 = tpu.matmul %1, %2, %cst {dimension_numbers = #tpu.dot_dimension_numbers<[1], [0], [0], [1], [0, 0, 1, 1], [], []>} : vector<32x32xbf16>, vector<32x64xbf16>, vector<32x64xf32> -> vector<32x64xf32>
    %c0_3 = arith.constant 0 : index
    %c0_4 = arith.constant 0 : index
    %4 = vector.load %arg3[%c0_3, %c0_4] : memref<1x64xf32, #tpu.memory_space<vmem>>, vector<1x64xf32>
    %5 = vector.broadcast %4 : vector<1x64xf32> to vector<32x64xf32>
    %6 = arith.addf %3, %5 : vector<32x64xf32>
    %cst_5 = arith.constant 0.000000e+00 : f32
    %7 = vector.broadcast %cst_5 : f32 to vector<32x64xf32>
    %8 = arith.maximumf %6, %7 : vector<32x64xf32>
    %9 = arith.truncf %8 : vector<32x64xf32> to vector<32x64xbf16>
    %c0_6 = arith.constant 0 : index
    %c0_7 = arith.constant 0 : index
    %10 = vector.load %arg4[%c0_6, %c0_7] : memref<64x32xbf16, #tpu.memory_space<vmem>>, vector<64x32xbf16>
    %cst_8 = arith.constant dense<0.000000e+00> : vector<32x32xf32>
    %11 = tpu.matmul %9, %10, %cst_8 {dimension_numbers = #tpu.dot_dimension_numbers<[1], [0], [0], [1], [0, 0, 1, 1], [], []>} : vector<32x64xbf16>, vector<64x32xbf16>, vector<32x32xf32> -> vector<32x32xf32>
    %c0_9 = arith.constant 0 : index
    %c0_10 = arith.constant 0 : index
    %12 = vector.load %arg5[%c0_9, %c0_10] : memref<1x32xf32, #tpu.memory_space<vmem>>, vector<1x32xf32>
    %13 = vector.broadcast %12 : vector<1x32xf32> to vector<32x32xf32>
    %14 = arith.addf %11, %13 : vector<32x32xf32>
    %15 = arith.addf %0, %14 : vector<32x32xf32>
    %c0_11 = arith.constant 0 : index
    %c0_12 = arith.constant 0 : index
    %16 = vector.load %arg6[%c0_11, %c0_12] : memref<1x32xf32, #tpu.memory_space<vmem>>, vector<1x32xf32>
    %c0_13 = arith.constant 0 : index
    %c0_14 = arith.constant 0 : index
    %17 = vector.load %arg7[%c0_13, %c0_14] : memref<1x32xf32, #tpu.memory_space<vmem>>, vector<1x32xf32>
    %cst_15 = arith.constant dense<0.000000e+00> : vector<32xf32>
    %18 = vector.multi_reduction <add>, %15, %cst_15 [1] : vector<32x32xf32> to vector<32xf32>
    %19 = vector.shape_cast %18 : vector<32xf32> to vector<32x1xf32>
    %cst_16 = arith.constant 3.200000e+01 : f32
    %20 = vector.broadcast %cst_16 : f32 to vector<32x1xf32>
    %21 = arith.divf %19, %20 : vector<32x1xf32>
    %22 = vector.broadcast %21 : vector<32x1xf32> to vector<32x32xf32>
    %23 = arith.subf %15, %22 : vector<32x32xf32>
    %24 = arith.mulf %23, %23 : vector<32x32xf32>
    %cst_17 = arith.constant dense<0.000000e+00> : vector<32xf32>
    %25 = vector.multi_reduction <add>, %24, %cst_17 [1] : vector<32x32xf32> to vector<32xf32>
    %26 = vector.shape_cast %25 : vector<32xf32> to vector<32x1xf32>
    %cst_18 = arith.constant 3.200000e+01 : f32
    %27 = vector.broadcast %cst_18 : f32 to vector<32x1xf32>
    %28 = arith.divf %26, %27 : vector<32x1xf32>
    %cst_19 = arith.constant 9.99999974E-6 : f32
    %29 = vector.broadcast %cst_19 : f32 to vector<32x1xf32>
    %30 = arith.addf %28, %29 : vector<32x1xf32>
    %31 = math.rsqrt %30 : vector<32x1xf32>
    %32 = vector.broadcast %31 : vector<32x1xf32> to vector<32x32xf32>
    %33 = arith.mulf %23, %32 : vector<32x32xf32>
    %34 = vector.broadcast %16 : vector<1x32xf32> to vector<32x32xf32>
    %35 = arith.mulf %33, %34 : vector<32x32xf32>
    %36 = vector.broadcast %17 : vector<1x32xf32> to vector<32x32xf32>
    %37 = arith.addf %35, %36 : vector<32x32xf32>
    %c0_20 = arith.constant 0 : index
    %c0_21 = arith.constant 0 : index
    %38 = vector.load %arg8[%c0_20, %c0_21] : memref<32x32xf32, #tpu.memory_space<vmem>>, vector<32x32xf32>
    tpu.vector_store %arg8[%c0_20, %c0_21], %37 {strides = array<i32>} : memref<32x32xf32, #tpu.memory_space<vmem>>, vector<32x32xf32>,
    return
  }
  func.func @transform_0(%arg0: i32) -> (i32, i32) {
    %c0_i32 = arith.constant 0 : i32
    %c0_i32_0 = arith.constant 0 : i32
    return %arg0, %c0_i32 : i32, i32
  }
  func.func @transform_1(%arg0: i32) -> (i32, i32) {
    %c0_i32 = arith.constant 0 : i32
    %c0_i32_0 = arith.constant 0 : i32
    %c0_i32_1 = arith.constant 0 : i32
    return %c0_i32, %c0_i32_0 : i32, i32
  }
  func.func @transform_2(%arg0: i32) -> (i32, i32) {
    %c0_i32 = arith.constant 0 : i32
    %c0_i32_0 = arith.constant 0 : i32
    %c0_i32_1 = arith.constant 0 : i32
    return %c0_i32, %c0_i32_0 : i32, i32
  }
  func.func @transform_3(%arg0: i32) -> (i32, i32) {
    %c0_i32 = arith.constant 0 : i32
    %c0_i32_0 = arith.constant 0 : i32
    %c0_i32_1 = arith.constant 0 : i32
    return %c0_i32, %c0_i32_0 : i32, i32
  }
  func.func @transform_4(%arg0: i32) -> (i32, i32) {
    %c0_i32 = arith.constant 0 : i32
    %c0_i32_0 = arith.constant 0 : i32
    %c0_i32_1 = arith.constant 0 : i32
    return %c0_i32, %c0_i32_0 : i32, i32
  }
  func.func @transform_5(%arg0: i32) -> (i32, i32) {
    %c0_i32 = arith.constant 0 : i32
    %c0_i32_0 = arith.constant 0 : i32
    %c0_i32_1 = arith.constant 0 : i32
    return %c0_i32, %c0_i32_0 : i32, i32
  }
  func.func @transform_6(%arg0: i32) -> (i32, i32) {
    %c0_i32 = arith.constant 0 : i32
    %c0_i32_0 = arith.constant 0 : i32
    %c0_i32_1 = arith.constant 0 : i32
    return %c0_i32, %c0_i32_0 : i32, i32
  }
  func.func @transform_7(%arg0: i32) -> (i32, i32) {
    %c0_i32 = arith.constant 0 : i32
    %c0_i32_0 = arith.constant 0 : i32
    return %arg0, %c0_i32 : i32, i32
  }
}

</mosaic_0001>

<llo_original>
// kernel: transformer_encoder_forward.5
$region0: #{transformer_encoder_forward.5}
  #allocation0 [shape = 'u32[]', space=smem, size = 0x4, offset = 0x4, fixed_abs, tag = 'smem constant byte address 0x4 - core index']
  #allocation1 [shape = 'u32[144,128]{1,0:T(1,128)}', space=vmem, size = 0x12000, scoped, tag = 'internal scratch']
  %s0 = inlined_call_operand.vmem [shape: f32[32,32], index: 0, kind: input, shape index: {}]
  %s1 = inlined_call_operand.vmem [shape: bf16[32,64], index: 1, kind: input, shape index: {}]
  %s2 = inlined_call_operand.vmem [shape: f32[1,64], index: 2, kind: input, shape index: {}]
  %s3 = inlined_call_operand.vmem [shape: bf16[64,32], index: 3, kind: input, shape index: {}]
  %s4 = inlined_call_operand.vmem [shape: f32[1,32], index: 4, kind: input, shape index: {}]
  %s5 = inlined_call_operand.vmem [shape: f32[1,32], index: 5, kind: input, shape index: {}]
  %s6 = inlined_call_operand.vmem [shape: f32[1,32], index: 6, kind: input, shape index: {}]
  %s7 = inlined_call_operand.vmem [shape: f32[32,32], index: 7, kind: output, shape index: {}]
  %s8 = sld [smem:[#allocation0]]
  $region38: #{transformer_encoder_forward.5} parent=0
    _
  %s10 = ssub.s32 1, %s8
  %s11 = scalar_select 0, %s10, %s8
  // Predicated region
  $region2: #{transformer_encoder_forward.5} parent=0 // pred_check
    _
  $region3: #{transformer_encoder_forward.5} parent=0 // pred_check_branch
    %13 = sbr.rel (0) target = $region5
  $region4: #{transformer_encoder_forward.5} parent=0 // pred_region
    _
  $region5: #{transformer_encoder_forward.5} parent=0 // pred_fallthru
    _
  // Predicated region
  $region6: #{transformer_encoder_forward.5} parent=0 // pred_check
    _
  $region7: #{transformer_encoder_forward.5} parent=0 // pred_check_branch
    %15 = sbr.rel (0) target = $region9
  $region8: #{transformer_encoder_forward.5} parent=0 // pred_region
    _
  $region9: #{transformer_encoder_forward.5} parent=0 // pred_fallthru
    _
  // Predicated region
  $region10: #{transformer_encoder_forward.5} parent=0 // pred_check
    _
  $region11: #{transformer_encoder_forward.5} parent=0 // pred_check_branch
    %17 = sbr.rel (0) target = $region13
  $region12: #{transformer_encoder_forward.5} parent=0 // pred_region
    _
  $region13: #{transformer_encoder_forward.5} parent=0 // pred_fallthru
    _
  // Predicated region
  $region14: #{transformer_encoder_forward.5} parent=0 // pred_check
    _
  $region15: #{transformer_encoder_forward.5} parent=0 // pred_check_branch
    %19 = sbr.rel (0) target = $region17
  $region16: #{transformer_encoder_forward.5} parent=0 // pred_region
    _
  $region17: #{transformer_encoder_forward.5} parent=0 // pred_fallthru
    _
  // Predicated region
  $region18: #{transformer_encoder_forward.5} parent=0 // pred_check
    _
  $region19: #{transformer_encoder_forward.5} parent=0 // pred_check_branch
    %21 = sbr.rel (0) target = $region21
  $region20: #{transformer_encoder_forward.5} parent=0 // pred_region
    _
  $region21: #{transformer_encoder_forward.5} parent=0 // pred_fallthru
    _
  // Predicated region
  $region22: #{transformer_encoder_forward.5} parent=0 // pred_check
    _
  $region23: #{transformer_encoder_forward.5} parent=0 // pred_check_branch
    %23 = sbr.rel (0) target = $region25
  $region24: #{transformer_encoder_forward.5} parent=0 // pred_region
    _
  $region25: #{transformer_encoder_forward.5} parent=0 // pred_fallthru
    _
  // Predicated region
  $region26: #{transformer_encoder_forward.5} parent=0 // pred_check
    _
  $region27: #{transformer_encoder_forward.5} parent=0 // pred_check_branch
    %25 = sbr.rel (0) target = $region29
  $region28: #{transformer_encoder_forward.5} parent=0 // pred_region
    _
  $region29: #{transformer_encoder_forward.5} parent=0 // pred_fallthru
    _
  %v27 = vld [vmem:[%s0] sm:$0xff]
  %v28 = vld [vmem:[%s0 + $0x8] sm:$0xff]
  %v29 = vld [vmem:[%s0 + $0x10] sm:$0xff]
  %v30 = vld [vmem:[%s0 + $0x18] sm:$0xff]
  %v31 = vpack.c.bf16 %v28, %v27
  %v32 = vpack.c.bf16 %v30, %v29
  %v33 = vld [vmem:[%s1] sm:$0xf]
  %v34 = vld [vmem:[%s1 + $0x4] sm:$0xf]
  %v35 = vld [vmem:[%s1 + $0x8] sm:$0xf]
  %v36 = vld [vmem:[%s1 + $0xc] sm:$0xf]
  %v37 = vld [vmem:[%s2] sm:$0x1]
  %v39 = vlaneseq
  %v40 = vshrl.u32 %v39, 7
  %v41 = vsub.s32 0, %v40
  %v42 = vrot.slane %v37, %v41
  %v48 = vunpack.c.l.b16 %v33
  %v49 = vunpack.c.l.b16 %v34
  %v50 = vunpack.c.l.b16 %v35
  %v51 = vunpack.c.l.b16 %v36
  %v52 = vpack.c.b16 %v49, %v48
  %v53 = vpack.c.b16 %v51, %v50
  %vm56 = vcmask 261120
  %v58 = vsel %vm56, %v31, 0
  %v61 = vsel %vm56, %v32, 0
  %63 = vmatprep.subr.bf16.mxu0 0
  %64 = vmatpush1.bf16.msra.mxu0 0
  %65 = vmatprep.subr.bf16.mxu0 0
  %66 = vmatpush1.bf16.msra.mxu0 0
  %67 = vmatprep.subr.bf16.mxu0 0
  %68 = vmatpush1.bf16.msra.mxu0 0
  %69 = vmatprep.subr.bf16.mxu0 0
  %70 = vmatpush1.bf16.msra.mxu0 0
  %71 = vmatprep.subr.bf16.mxu0 0
  %72 = vmatpush1.bf16.msra.mxu0 0
  %73 = vmatprep.subr.bf16.mxu0 0
  %74 = vmatpush1.bf16.msra.mxu0 0
  %75 = vmatprep.subr.bf16.mxu0 0
  %76 = vmatpush1.bf16.msra.mxu0 %v53
  %77 = vmatprep.subr.bf16.mxu0 0
  %78 = vmatpush1.bf16.msra.mxu0 %v52
  %79 = vmatprep.subr.bf16.mxu0 0
  %80 = vmatpush2.bf16.msra.mxu0 0
  %81 = vmatprep.subr.bf16.mxu0 0
  %82 = vmatpush2.bf16.msra.mxu0 0
  %83 = vmatprep.subr.bf16.mxu0 0
  %84 = vmatpush2.bf16.msra.mxu0 0
  %85 = vmatprep.subr.bf16.mxu0 0
  %86 = vmatpush2.bf16.msra.mxu0 0
  %87 = vmatprep.subr.bf16.mxu0 0
  %88 = vmatpush2.bf16.msra.mxu0 0
  %89 = vmatprep.subr.bf16.mxu0 0
  %90 = vmatpush2.bf16.msra.mxu0 0
  %91 = vmatprep.subr.bf16.mxu0 0
  %92 = vmatpush2.bf16.msra.mxu0 0
  %93 = vmatprep.subr.bf16.mxu0 0
  %94 = vmatpush2.bf16.msra.mxu0 0
  %95 = vmatprep.mubr.bf16.mxu0 0
  %96 = vmatmul.mubr.bf16.gmra.mxu0 %v58
  %v97 = vpop.f32.mrf.mxu0
  %v98 = vadd.f32 %v42, %v97
  %v99 = vpop.f32.mrf.mxu0
  %v100 = vpop.f32.mrf.mxu0
  %v101 = vadd.f32 %v42, %v100
  %v102 = vpop.f32.mrf.mxu0
  %103 = vmatprep.mubr.bf16.mxu0 0
  %104 = vmatmul.mubr.bf16.gmra.mxu0 %v61
  %v105 = vpop.f32.mrf.mxu0
  %v106 = vadd.f32 %v42, %v105
  %v107 = vpop.f32.mrf.mxu0
  %v108 = vpop.f32.mrf.mxu0
  %v109 = vadd.f32 %v42, %v108
  %v110 = vpop.f32.mrf.mxu0
  %111 = vdwg.mxu0
  %v112 = vmax.f32 %v98, 0.0
  %v113 = vmax.f32 %v101, 0.0
  %v114 = vmax.f32 %v106, 0.0
  %v115 = vmax.f32 %v109, 0.0
  %v116 = vpack.c.bf16 %v113, %v112
  %v117 = vpack.c.bf16 %v115, %v114
  %v118 = vld [vmem:[%s3] sm:$0xf]
  %v119 = vld [vmem:[%s3 + $0x4] sm:$0xf]
  %v120 = vld [vmem:[%s3 + $0x8] sm:$0xf]
  %v121 = vld [vmem:[%s3 + $0xc] sm:$0xf]
  %v122 = vld [vmem:[%s3 + $0x10] sm:$0xf]
  %v123 = vld [vmem:[%s3 + $0x14] sm:$0xf]
  %v124 = vld [vmem:[%s3 + $0x18] sm:$0xf]
  %v125 = vld [vmem:[%s3 + $0x1c] sm:$0xf]
  %v126 = vld [vmem:[%s4] sm:$0x1]
  %v128 = vlaneseq
  %v129 = vshrl.u32 %v128, 7
  %v130 = vsub.s32 0, %v129
  %v131 = vrot.slane %v126, %v130
  %v141 = vunpack.c.l.b16 %v118
  %v142 = vunpack.c.l.b16 %v119
  %v143 = vunpack.c.l.b16 %v120
  %v144 = vunpack.c.l.b16 %v121
  %v145 = vunpack.c.l.b16 %v122
  %v146 = vunpack.c.l.b16 %v123
  %v147 = vunpack.c.l.b16 %v124
  %v148 = vunpack.c.l.b16 %v125
  %v149 = vpack.c.b16 %v142, %v141
  %v150 = vpack.c.b16 %v144, %v143
  %v151 = vpack.c.b16 %v146, %v145
  %v152 = vpack.c.b16 %v148, %v147
  %vm157 = vcmask 523264
  %v159 = vsel %vm157, %v116, 0
  %v162 = vsel %vm157, %v117, 0
  %164 = vmatprep.subr.bf16.mxu0 0
  %165 = vmatpush1.bf16.msra.mxu0 0
  %166 = vmatprep.subr.bf16.mxu0 0
  %167 = vmatpush1.bf16.msra.mxu0 0
  %168 = vmatprep.subr.bf16.mxu0 0
  %169 = vmatpush1.bf16.msra.mxu0 0
  %170 = vmatprep.subr.bf16.mxu0 0
  %171 = vmatpush1.bf16.msra.mxu0 0
  %172 = vmatprep.subr.bf16.mxu0 0
  %173 = vmatpush1.bf16.msra.mxu0 %v152
  %174 = vmatprep.subr.bf16.mxu0 0
  %175 = vmatpush1.bf16.msra.mxu0 %v151
  %176 = vmatprep.subr.bf16.mxu0 0
  %177 = vmatpush1.bf16.msra.mxu0 %v150
  %178 = vmatprep.subr.bf16.mxu0 0
  %179 = vmatpush1.bf16.msra.mxu0 %v149
  %180 = vmatprep.subr.bf16.mxu0 0
  %181 = vmatpush2.bf16.msra.mxu0 0
  %182 = vmatprep.subr.bf16.mxu0 0
  %183 = vmatpush2.bf16.msra.mxu0 0
  %184 = vmatprep.subr.bf16.mxu0 0
  %185 = vmatpush2.bf16.msra.mxu0 0
  %186 = vmatprep.subr.bf16.mxu0 0
  %187 = vmatpush2.bf16.msra.mxu0 0
  %188 = vmatprep.subr.bf16.mxu0 0
  %189 = vmatpush2.bf16.msra.mxu0 0
  %190 = vmatprep.subr.bf16.mxu0 0
  %191 = vmatpush2.bf16.msra.mxu0 0
  %192 = vmatprep.subr.bf16.mxu0 0
  %193 = vmatpush2.bf16.msra.mxu0 0
  %194 = vmatprep.subr.bf16.mxu0 0
  %195 = vmatpush2.bf16.msra.mxu0 0
  %196 = vmatprep.mubr.bf16.mxu0 0
  %197 = vmatmul.mubr.bf16.gmra.mxu0 %v159
  %v198 = vpop.f32.mrf.mxu0
  %v199 = vadd.f32 %v131, %v198
  %v200 = vpop.f32.mrf.mxu0
  %v201 = vpop.f32.mrf.mxu0
  %v202 = vadd.f32 %v131, %v201
  %v203 = vpop.f32.mrf.mxu0
  %204 = vmatprep.mubr.bf16.mxu0 0
  %205 = vmatmul.mubr.bf16.gmra.mxu0 %v162
  %v206 = vpop.f32.mrf.mxu0
  %v207 = vadd.f32 %v131, %v206
  %v208 = vpop.f32.mrf.mxu0
  %v209 = vpop.f32.mrf.mxu0
  %v210 = vadd.f32 %v131, %v209
  %v211 = vpop.f32.mrf.mxu0
  %212 = vdwg.mxu0
  %v213 = vadd.f32 %v27, %v199
  %v214 = vadd.f32 %v28, %v202
  %v215 = vadd.f32 %v29, %v207
  %v216 = vadd.f32 %v30, %v210
  %v217 = vld [vmem:[%s5] sm:$0x1]
  %v218 = vld [vmem:[%s6] sm:$0x1]
  %v219 = vsel %vm56, %v213, 0.0
  %220 = vadd.xlane.f32.xlu0 %v219
  %v221 = vpop.xlane.xlu0 %220
  %v222 = vsel %vm56, %v214, 0.0
  %223 = vadd.xlane.f32.xlu0 %v222
  %v224 = vpop.xlane.xlu0 %223
  %v225 = vsel %vm56, %v215, 0.0
  %226 = vadd.xlane.f32.xlu0 %v225
  %v227 = vpop.xlane.xlu0 %226
  %v228 = vsel %vm56, %v216, 0.0
  %229 = vadd.xlane.f32.xlu0 %v228
  %v230 = vpop.xlane.xlu0 %229
  %v231 = vrcp.pop 32.0
  %v232 = vmul.f32 %v221, %v231
  %v233 = vmul.f32 %v224, %v231
  %v234 = vmul.f32 %v227, %v231
  %v235 = vmul.f32 %v230, %v231
  %v236 = vsub.f32 %v213, %v232
  %v237 = vsub.f32 %v214, %v233
  %v238 = vsub.f32 %v215, %v234
  %v239 = vsub.f32 %v216, %v235
  %v240 = vmul.f32 %v236, %v236
  %v241 = vmul.f32 %v237, %v237
  %v242 = vmul.f32 %v238, %v238
  %v243 = vmul.f32 %v239, %v239
  %v244 = vsel %vm56, %v240, 0.0
  %245 = vadd.xlane.f32.xlu0 %v244
  %v246 = vpop.xlane.xlu0 %245
  %v247 = vsel %vm56, %v241, 0.0
  %248 = vadd.xlane.f32.xlu0 %v247
  %v249 = vpop.xlane.xlu0 %248
  %v250 = vsel %vm56, %v242, 0.0
  %251 = vadd.xlane.f32.xlu0 %v250
  %v252 = vpop.xlane.xlu0 %251
  %v253 = vsel %vm56, %v243, 0.0
  %254 = vadd.xlane.f32.xlu0 %v253
  %v255 = vpop.xlane.xlu0 %254
  %v256 = vmul.f32 %v246, %v231
  %v257 = vmul.f32 %v249, %v231
  %v258 = vmul.f32 %v252, %v231
  %v259 = vmul.f32 %v255, %v231
  %v260 = vadd.f32 %v256, 1e-05
  %v261 = vadd.f32 %v257, 1e-05
  %v262 = vadd.f32 %v258, 1e-05
  %v263 = vadd.f32 %v259, 1e-05
  %v264 = vrsqrt.pop %v260
  %v265 = vrsqrt.pop %v261
  %v266 = vrsqrt.pop %v262
  %v267 = vrsqrt.pop %v263
  %v268 = vmul.f32 %v236, %v264
  %v269 = vmul.f32 %v237, %v265
  %v270 = vmul.f32 %v238, %v266
  %v271 = vmul.f32 %v239, %v267
  %v273 = vlaneseq
  %v274 = vshrl.u32 %v273, 7
  %v275 = vsub.s32 0, %v274
  %v276 = vrot.slane %v217, %v275
  %v278 = vmul.f32 %v268, %v276
  %v279 = vmul.f32 %v269, %v276
  %v280 = vmul.f32 %v270, %v276
  %v281 = vmul.f32 %v271, %v276
  %v283 = vlaneseq
  %v284 = vshrl.u32 %v283, 7
  %v285 = vsub.s32 0, %v284
  %v286 = vrot.slane %v218, %v285
  %v288 = vadd.f32 %v278, %v286
  %v289 = vadd.f32 %v279, %v286
  %v290 = vadd.f32 %v280, %v286
  %v291 = vadd.f32 %v281, %v286
  %292 = vst.msk [vmem:[%s7] sm:$0xff] %vm56, %v288
  %293 = vst.msk [vmem:[%s7 + $0x8] sm:$0xff] %vm56, %v289
  %294 = vst.msk [vmem:[%s7 + $0x10] sm:$0xff] %vm56, %v290
  %295 = vst.msk [vmem:[%s7 + $0x18] sm:$0xff] %vm56, %v291
  // Predicated region
  $region30: #{transformer_encoder_forward.5} parent=0 // pred_check
    _
  $region31: #{transformer_encoder_forward.5} parent=0 // pred_check_branch
    %297 = sbr.rel (0) target = $region33
  $region32: #{transformer_encoder_forward.5} parent=0 // pred_region
    _
  $region33: #{transformer_encoder_forward.5} parent=0 // pred_fallthru
    _
  // Predicated region
  $region34: #{transformer_encoder_forward.5} parent=0 // pred_check
    _
  $region35: #{transformer_encoder_forward.5} parent=0 // pred_check_branch
    %299 = sbr.rel (0) target = $region37
  $region36: #{transformer_encoder_forward.5} parent=0 // pred_region
    _
  $region37: #{transformer_encoder_forward.5} parent=0 // pred_fallthru
    _

// kernel: transformer_encoder_forward.4
$region0: #{transformer_encoder_forward.4}
  #allocation0 [shape = 'u32[]', space=smem, size = 0x4, offset = 0x4, fixed_abs, tag = 'smem constant byte address 0x4 - core index']
  #allocation1 [shape = 'u32[144,128]{1,0:T(1,128)}', space=vmem, size = 0x12000, scoped, tag = 'internal scratch']
  %s0 = inlined_call_operand.vmem [shape: f32[2,16,32], index: 0, kind: input, shape index: {}]
  %s1 = inlined_call_operand.vmem [shape: f32[2,16,32], index: 1, kind: input, shape index: {}]
  %s2 = inlined_call_operand.vmem [shape: f32[2,1,16], index: 2, kind: input, shape index: {}]
  %s3 = inlined_call_operand.vmem [shape: bf16[32,64], index: 3, kind: input, shape index: {}]
  %s4 = inlined_call_operand.vmem [shape: f32[1,64], index: 4, kind: input, shape index: {}]
  %s5 = inlined_call_operand.vmem [shape: bf16[32,32], index: 5, kind: input, shape index: {}]
  %s6 = inlined_call_operand.vmem [shape: f32[1,32], index: 6, kind: input, shape index: {}]
  %s7 = inlined_call_operand.vmem [shape: bf16[32,32], index: 7, kind: input, shape index: {}]
  %s8 = inlined_call_operand.vmem [shape: f32[1,32], index: 8, kind: input, shape index: {}]
  %s9 = inlined_call_operand.vmem [shape: f32[1,32], index: 9, kind: input, shape index: {}]
  %s10 = inlined_call_operand.vmem [shape: f32[1,32], index: 10, kind: input, shape index: {}]
  %s11 = inlined_call_operand.vmem [shape: f32[2,16,32], index: 11, kind: output, shape index: {}]
  %s12 = sld [smem:[#allocation0]]
  $region77: #{transformer_encoder_forward.4} parent=0
    _
  %s14 = ssub.s32 1, %s12
  %s15 = scalar_select 0, %s14, %s12
  loop: start=0, step=1, limit=4
  $region2: #{transformer_encoder_forward.4} parent=0 // loop_pre_header
    _
  $region3: #{transformer_encoder_forward.4} parent=0 // loop_header
    %s17 = sphi 0, %s21
    %p18 = scmp.ge.s32.totalorder %s17, 4
    %s27 = sphi 0, %s29
    %s30 = sphi 0, %s27
    %s31 = sphi 0, %s30
    %s47 = sphi 0, %s31
    %s53 = sphi 0, %s55
    %s56 = sphi 0, %s53
    %s57 = sphi 0, %s56
    %s73 = sphi 0, %s57
    %s79 = sphi 0, %s81
    %s82 = sphi 0, %s79
    %s83 = sphi 0, %s82
    %s99 = sphi 0, %s83
    %s103 = sphi 0, %s103
    %s105 = sphi 0, %s103
    %s106 = sphi 0, %s105
    %s120 = sphi 0, %s106
    %s124 = sphi 0, %s124
    %s126 = sphi 0, %s124
    %s127 = sphi 0, %s126
    %s141 = sphi 0, %s127
    %s145 = sphi 0, %s145
    %s147 = sphi 0, %s145
    %s148 = sphi 0, %s147
    %s162 = sphi 0, %s148
    %s166 = sphi 0, %s166
    %s168 = sphi 0, %s166
    %s169 = sphi 0, %s168
    %s183 = sphi 0, %s169
    %s187 = sphi 0, %s187
    %s189 = sphi 0, %s187
    %s190 = sphi 0, %s189
    %s204 = sphi 0, %s190
    %s208 = sphi 0, %s208
    %s210 = sphi 0, %s208
    %s211 = sphi 0, %s210
    %s225 = sphi 0, %s211
    %s229 = sphi 0, %s229
    %s231 = sphi 0, %s229
    %s232 = sphi 0, %s231
    %s246 = sphi 0, %s232
    %s250 = sphi 0, %s250
    %s252 = sphi 0, %s250
    %s253 = sphi 0, %s252
    %s267 = sphi 0, %s253
    %s273 = sphi 0, %s275
    %s276 = sphi 0, %s273
    %s277 = sphi 0, %s276
    %s293 = sphi 0, %s277
  $region4: #{transformer_encoder_forward.4} parent=0 // loop_header_branch
    %20 = sbr.rel (%p18) target = $region8
  $region5: #{transformer_encoder_forward.4} parent=0 // loop_body
    %s22 = ssub.s32 %s17, 1
    %s23 = ssub.s32 %s17, 2
    %s24 = sadd.s32 %s17, 1
    %s25 = ssub.s32 %s17, %s24
    %p26 = scmp.eq.s32.totalorder %s25, 0
    %s28 = sadd.s32 %s27, 1
    %s29 = scalar_select %p26, %s27, %s28
    %p32 = pneg %p26
    %p33 = scmp.eq.s32.totalorder %s17, 1
    %p34 = por %p32, %p33
    %p35 = scmp.ne.s32.totalorder %s27, %s30
    %p36 = scmp.eq.s32.totalorder %s17, 0
    %p37 = por %p35, %p36
    %p38 = scmp.ne.s32.totalorder %s27, %s30
    %p39 = scmp.eq.s32.totalorder %s22, 1
    %p40 = por %p38, %p39
    %p41 = scmp.ne.s32.totalorder %s30, %s31
    %p42 = scmp.eq.s32.totalorder %s22, 0
    %p43 = por %p41, %p42
    %p44 = scmp.ne.s32.totalorder %s30, %s31
    %p45 = scmp.eq.s32.totalorder %s23, 1
    %p46 = por %p44, %p45
    %p48 = scmp.ne.s32.totalorder %s31, %s47
    %p49 = scmp.eq.s32.totalorder %s23, 0
    %p50 = por %p48, %p49
    %s51 = ssub.s32 %s17, %s24
    %p52 = scmp.eq.s32.totalorder %s51, 0
    %s54 = sadd.s32 %s53, 1
    %s55 = scalar_select %p52, %s53, %s54
    %p58 = pneg %p52
    %p59 = scmp.eq.s32.totalorder %s17, 1
    %p60 = por %p58, %p59
    %p61 = scmp.ne.s32.totalorder %s53, %s56
    %p62 = scmp.eq.s32.totalorder %s17, 0
    %p63 = por %p61, %p62
    %p64 = scmp.ne.s32.totalorder %s53, %s56
    %p65 = scmp.eq.s32.totalorder %s22, 1
    %p66 = por %p64, %p65
    %p67 = scmp.ne.s32.totalorder %s56, %s57
    %p68 = scmp.eq.s32.totalorder %s22, 0
    %p69 = por %p67, %p68
    %p70 = scmp.ne.s32.totalorder %s56, %s57
    %p71 = scmp.eq.s32.totalorder %s23, 1
    %p72 = por %p70, %p71
    %p74 = scmp.ne.s32.totalorder %s57, %s73
    %p75 = scmp.eq.s32.totalorder %s23, 0
    %p76 = por %p74, %p75
    %s77 = ssub.s32 %s17, %s24
    %p78 = scmp.eq.s32.totalorder %s77, 0
    %s80 = sadd.s32 %s79, 1
    %s81 = scalar_select %p78, %s79, %s80
    %p84 = pneg %p78
    %p85 = scmp.eq.s32.totalorder %s17, 1
    %p86 = por %p84, %p85
    %p87 = scmp.ne.s32.totalorder %s79, %s82
    %p88 = scmp.eq.s32.totalorder %s17, 0
    %p89 = por %p87, %p88
    %p90 = scmp.ne.s32.totalorder %s79, %s82
    %p91 = scmp.eq.s32.totalorder %s22, 1
    %p92 = por %p90, %p91
    %p93 = scmp.ne.s32.totalorder %s82, %s83
    %p94 = scmp.eq.s32.totalorder %s22, 0
    %p95 = por %p93, %p94
    %p96 = scmp.ne.s32.totalorder %s82, %s83
    %p97 = scmp.eq.s32.totalorder %s23, 1
    %p98 = por %p96, %p97
    %p100 = scmp.ne.s32.totalorder %s83, %s99
    %p101 = scmp.eq.s32.totalorder %s23, 0
    %p102 = por %p100, %p101
    %s104 = sadd.s32 %s103, 1
    %p107 = scmp.eq.s32.totalorder %s17, 1
    %p108 = scmp.ne.s32.totalorder %s103, %s105
    %p109 = scmp.eq.s32.totalorder %s17, 0
    %p110 = por %p108, %p109
    %p111 = scmp.ne.s32.totalorder %s103, %s105
    %p112 = scmp.eq.s32.totalorder %s22, 1
    %p113 = por %p111, %p112
    %p114 = scmp.ne.s32.totalorder %s105, %s106
    %p115 = scmp.eq.s32.totalorder %s22, 0
    %p116 = por %p114, %p115
    %p117 = scmp.ne.s32.totalorder %s105, %s106
    %p118 = scmp.eq.s32.totalorder %s23, 1
    %p119 = por %p117, %p118
    %p121 = scmp.ne.s32.totalorder %s106, %s120
    %p122 = scmp.eq.s32.totalorder %s23, 0
    %p123 = por %p121, %p122
    %s125 = sadd.s32 %s124, 1
    %p128 = scmp.eq.s32.totalorder %s17, 1
    %p129 = scmp.ne.s32.totalorder %s124, %s126
    %p130 = scmp.eq.s32.totalorder %s17, 0
    %p131 = por %p129, %p130
    %p132 = scmp.ne.s32.totalorder %s124, %s126
    %p133 = scmp.eq.s32.totalorder %s22, 1
    %p134 = por %p132, %p133
    %p135 = scmp.ne.s32.totalorder %s126, %s127
    %p136 = scmp.eq.s32.totalorder %s22, 0
    %p137 = por %p135, %p136
    %p138 = scmp.ne.s32.totalorder %s126, %s127
    %p139 = scmp.eq.s32.totalorder %s23, 1
    %p140 = por %p138, %p139
    %p142 = scmp.ne.s32.totalorder %s127, %s141
    %p143 = scmp.eq.s32.totalorder %s23, 0
    %p144 = por %p142, %p143
    %s146 = sadd.s32 %s145, 1
    %p149 = scmp.eq.s32.totalorder %s17, 1
    %p150 = scmp.ne.s32.totalorder %s145, %s147
    %p151 = scmp.eq.s32.totalorder %s17, 0
    %p152 = por %p150, %p151
    %p153 = scmp.ne.s32.totalorder %s145, %s147
    %p154 = scmp.eq.s32.totalorder %s22, 1
    %p155 = por %p153, %p154
    %p156 = scmp.ne.s32.totalorder %s147, %s148
    %p157 = scmp.eq.s32.totalorder %s22, 0
    %p158 = por %p156, %p157
    %p159 = scmp.ne.s32.totalorder %s147, %s148
    %p160 = scmp.eq.s32.totalorder %s23, 1
    %p161 = por %p159, %p160
    %p163 = scmp.ne.s32.totalorder %s148, %s162
    %p164 = scmp.eq.s32.totalorder %s23, 0
    %p165 = por %p163, %p164
    %s167 = sadd.s32 %s166, 1
    %p170 = scmp.eq.s32.totalorder %s17, 1
    %p171 = scmp.ne.s32.totalorder %s166, %s168
    %p172 = scmp.eq.s32.totalorder %s17, 0
    %p173 = por %p171, %p172
    %p174 = scmp.ne.s32.totalorder %s166, %s168
    %p175 = scmp.eq.s32.totalorder %s22, 1
    %p176 = por %p174, %p175
    %p177 = scmp.ne.s32.totalorder %s168, %s169
    %p178 = scmp.eq.s32.totalorder %s22, 0
    %p179 = por %p177, %p178
    %p180 = scmp.ne.s32.totalorder %s168, %s169
    %p181 = scmp.eq.s32.totalorder %s23, 1
    %p182 = por %p180, %p181
    %p184 = scmp.ne.s32.totalorder %s169, %s183
    %p185 = scmp.eq.s32.totalorder %s23, 0
    %p186 = por %p184, %p185
    %s188 = sadd.s32 %s187, 1
    %p191 = scmp.eq.s32.totalorder %s17, 1
    %p192 = scmp.ne.s32.totalorder %s187, %s189
    %p193 = scmp.eq.s32.totalorder %s17, 0
    %p194 = por %p192, %p193
    %p195 = scmp.ne.s32.totalorder %s187, %s189
    %p196 = scmp.eq.s32.totalorder %s22, 1
    %p197 = por %p195, %p196
    %p198 = scmp.ne.s32.totalorder %s189, %s190
    %p199 = scmp.eq.s32.totalorder %s22, 0
    %p200 = por %p198, %p199
    %p201 = scmp.ne.s32.totalorder %s189, %s190
    %p202 = scmp.eq.s32.totalorder %s23, 1
    %p203 = por %p201, %p202
    %p205 = scmp.ne.s32.totalorder %s190, %s204
    %p206 = scmp.eq.s32.totalorder %s23, 0
    %p207 = por %p205, %p206
    %s209 = sadd.s32 %s208, 1
    %p212 = scmp.eq.s32.totalorder %s17, 1
    %p213 = scmp.ne.s32.totalorder %s208, %s210
    %p214 = scmp.eq.s32.totalorder %s17, 0
    %p215 = por %p213, %p214
    %p216 = scmp.ne.s32.totalorder %s208, %s210
    %p217 = scmp.eq.s32.totalorder %s22, 1
    %p218 = por %p216, %p217
    %p219 = scmp.ne.s32.totalorder %s210, %s211
    %p220 = scmp.eq.s32.totalorder %s22, 0
    %p221 = por %p219, %p220
    %p222 = scmp.ne.s32.totalorder %s210, %s211
    %p223 = scmp.eq.s32.totalorder %s23, 1
    %p224 = por %p222, %p223
    %p226 = scmp.ne.s32.totalorder %s211, %s225
    %p227 = scmp.eq.s32.totalorder %s23, 0
    %p228 = por %p226, %p227
    %s230 = sadd.s32 %s229, 1
    %p233 = scmp.eq.s32.totalorder %s17, 1
    %p234 = scmp.ne.s32.totalorder %s229, %s231
    %p235 = scmp.eq.s32.totalorder %s17, 0
    %p236 = por %p234, %p235
    %p237 = scmp.ne.s32.totalorder %s229, %s231
    %p238 = scmp.eq.s32.totalorder %s22, 1
    %p239 = por %p237, %p238
    %p240 = scmp.ne.s32.totalorder %s231, %s232
    %p241 = scmp.eq.s32.totalorder %s22, 0
    %p242 = por %p240, %p241
    %p243 = scmp.ne.s32.totalorder %s231, %s232
    %p244 = scmp.eq.s32.totalorder %s23, 1
    %p245 = por %p243, %p244
    %p247 = scmp.ne.s32.totalorder %s232, %s246
    %p248 = scmp.eq.s32.totalorder %s23, 0
    %p249 = por %p247, %p248
    %s251 = sadd.s32 %s250, 1
    %p254 = scmp.eq.s32.totalorder %s17, 1
    %p255 = scmp.ne.s32.totalorder %s250, %s252
    %p256 = scmp.eq.s32.totalorder %s17, 0
    %p257 = por %p255, %p256
    %p258 = scmp.ne.s32.totalorder %s250, %s252
    %p259 = scmp.eq.s32.totalorder %s22, 1
    %p260 = por %p258, %p259
    %p261 = scmp.ne.s32.totalorder %s252, %s253
    %p262 = scmp.eq.s32.totalorder %s22, 0
    %p263 = por %p261, %p262
    %p264 = scmp.ne.s32.totalorder %s252, %s253
    %p265 = scmp.eq.s32.totalorder %s23, 1
    %p266 = por %p264, %p265
    %p268 = scmp.ne.s32.totalorder %s253, %s267
    %p269 = scmp.eq.s32.totalorder %s23, 0
    %p270 = por %p268, %p269
    %s271 = ssub.s32 %s17, %s24
    %p272 = scmp.eq.s32.totalorder %s271, 0
    %s274 = sadd.s32 %s273, 1
    %s275 = scalar_select %p272, %s273, %s274
    %p278 = pneg %p272
    %p279 = scmp.eq.s32.totalorder %s17, 1
    %p280 = por %p278, %p279
    %p281 = scmp.ne.s32.totalorder %s273, %s276
    %p282 = scmp.eq.s32.totalorder %s17, 0
    %p283 = por %p281, %p282
    %p284 = scmp.ne.s32.totalorder %s273, %s276
    %p285 = scmp.eq.s32.totalorder %s22, 1
    %p286 = por %p284, %p285
    %p287 = scmp.ne.s32.totalorder %s276, %s277
    %p288 = scmp.eq.s32.totalorder %s22, 0
    %p289 = por %p287, %p288
    %p290 = scmp.ne.s32.totalorder %s276, %s277
    %p291 = scmp.eq.s32.totalorder %s23, 1
    %p292 = por %p290, %p291
    %p294 = scmp.ne.s32.totalorder %s277, %s293
    %p295 = scmp.eq.s32.totalorder %s23, 0
    %p296 = por %p294, %p295
    %p297 = scmp.le.s32.totalorder 1, %s17
    %p298 = scmp.lt.s32.totalorder %s17, 3
    %p299 = pnand %p297, %p298
    %p300 = pneg %p299
    // Predicated region
    $region9: #{transformer_encoder_forward.4} parent=5 // pred_check
      _
    $region10: #{transformer_encoder_forward.4} parent=5 // pred_check_branch
      %302 = sbr.rel (%p299) target = $region12
    $region11: #{transformer_encoder_forward.4} parent=5 // pred_region
      %s303 = ssub.s32 %s17, 1
      // Predicated region
      $region13: #{transformer_encoder_forward.4} parent=11 // pred_check
        %p304 = pneg %p116
      $region14: #{transformer_encoder_forward.4} parent=11 // pred_check_branch
        %306 = sbr.rel (%p304) target = $region16
      $region15: #{transformer_encoder_forward.4} parent=11 // pred_region
        _
      $region16: #{transformer_encoder_forward.4} parent=11 // pred_fallthru
        _
      // Predicated region
      $region17: #{transformer_encoder_forward.4} parent=11 // pred_check
        %p307 = pneg %p137
      $region18: #{transformer_encoder_forward.4} parent=11 // pred_check_branch
        %309 = sbr.rel (%p307) target = $region20
      $region19: #{transformer_encoder_forward.4} parent=11 // pred_region
        _
      $region20: #{transformer_encoder_forward.4} parent=11 // pred_fallthru
        _
      // Predicated region
      $region21: #{transformer_encoder_forward.4} parent=11 // pred_check
        %p310 = pneg %p158
      $region22: #{transformer_encoder_forward.4} parent=11 // pred_check_branch
        %312 = sbr.rel (%p310) target = $region24
      $region23: #{transformer_encoder_forward.4} parent=11 // pred_region
        _
      $region24: #{transformer_encoder_forward.4} parent=11 // pred_fallthru
        _
      // Predicated region
      $region25: #{transformer_encoder_forward.4} parent=11 // pred_check
        %p313 = pneg %p179
      $region26: #{transformer_encoder_forward.4} parent=11 // pred_check_branch
        %315 = sbr.rel (%p313) target = $region28
      $region27: #{transformer_encoder_forward.4} parent=11 // pred_region
        _
      $region28: #{transformer_encoder_forward.4} parent=11 // pred_fallthru
        _
      // Predicated region
      $region29: #{transformer_encoder_forward.4} parent=11 // pred_check
        %p316 = pneg %p200
      $region30: #{transformer_encoder_forward.4} parent=11 // pred_check_branch
        %318 = sbr.rel (%p316) target = $region32
      $region31: #{transformer_encoder_forward.4} parent=11 // pred_region
        _
      $region32: #{transformer_encoder_forward.4} parent=11 // pred_fallthru
        _
      // Predicated region
      $region33: #{transformer_encoder_forward.4} parent=11 // pred_check
        %p319 = pneg %p221
      $region34: #{transformer_encoder_forward.4} parent=11 // pred_check_branch
        %321 = sbr.rel (%p319) target = $region36
      $region35: #{transformer_encoder_forward.4} parent=11 // pred_region
        _
      $region36: #{transformer_encoder_forward.4} parent=11 // pred_fallthru
        _
      // Predicated region
      $region37: #{transformer_encoder_forward.4} parent=11 // pred_check
        %p322 = pneg %p242
      $region38: #{transformer_encoder_forward.4} parent=11 // pred_check_branch
        %324 = sbr.rel (%p322) target = $region40
      $region39: #{transformer_encoder_forward.4} parent=11 // pred_region
        _
      $region40: #{transformer_encoder_forward.4} parent=11 // pred_fallthru
        _
      // Predicated region
      $region41: #{transformer_encoder_forward.4} parent=11 // pred_check
        %p325 = pneg %p263
      $region42: #{transformer_encoder_forward.4} parent=11 // pred_check_branch
        %327 = sbr.rel (%p325) target = $region44
      $region43: #{transformer_encoder_forward.4} parent=11 // pred_region
        _
      $region44: #{transformer_encoder_forward.4} parent=11 // pred_fallthru
        _
    $region12: #{transformer_encoder_forward.4} parent=5 // pred_fallthru
      _
    %p328 = scmp.lt.s32.totalorder %s17, 2
    // Predicated region
    $region45: #{transformer_encoder_forward.4} parent=5 // pred_check
      %p329 = pneg %p328
    $region46: #{transformer_encoder_forward.4} parent=5 // pred_check_branch
      %331 = sbr.rel (%p329) target = $region48
    $region47: #{transformer_encoder_forward.4} parent=5 // pred_region
      // Predicated region
      $region49: #{transformer_encoder_forward.4} parent=47 // pred_check
        %p332 = pneg %p37
      $region50: #{transformer_encoder_forward.4} parent=47 // pred_check_branch
        %334 = sbr.rel (%p332) target = $region52
      $region51: #{transformer_encoder_forward.4} parent=47 // pred_region
        %p335 = scmp.lt.s32.totalorder %s17, 1
        %s336 = scalar_select %p335, %s17, 1
        %s337 = smul.addr %s336, 2
        %s338 = smul.addr %s337, 8
        %s339 = scalar_lea.vmem %s0, %s338
      $region52: #{transformer_encoder_forward.4} parent=47 // pred_fallthru
        _
      // Predicated region
      $region53: #{transformer_encoder_forward.4} parent=47 // pred_check
        %p340 = pneg %p63
      $region54: #{transformer_encoder_forward.4} parent=47 // pred_check_branch
        %342 = sbr.rel (%p340) target = $region56
      $region55: #{transformer_encoder_forward.4} parent=47 // pred_region
        %p343 = scmp.lt.s32.totalorder %s17, 1
        %s344 = scalar_select %p343, %s17, 1
        %s345 = smul.addr %s344, 2
        %s346 = smul.addr %s345, 8
        %s347 = scalar_lea.vmem %s1, %s346
      $region56: #{transformer_encoder_forward.4} parent=47 // pred_fallthru
        _
      // Predicated region
      $region57: #{transformer_encoder_forward.4} parent=47 // pred_check
        %p348 = pneg %p89
      $region58: #{transformer_encoder_forward.4} parent=47 // pred_check_branch
        %350 = sbr.rel (%p348) target = $region60
      $region59: #{transformer_encoder_forward.4} parent=47 // pred_region
        %p351 = scmp.lt.s32.totalorder %s17, 1
        %s352 = scalar_select %p351, %s17, 1
        %s353 = scalar_lea.vmem %s2, %s352
      $region60: #{transformer_encoder_forward.4} parent=47 // pred_fallthru
        _
    $region48: #{transformer_encoder_forward.4} parent=5 // pred_fallthru
      _
    %p354 = scmp.le.s32.totalorder 1, %s17
    %p355 = scmp.lt.s32.totalorder %s17, 3
    %p356 = pnand %p354, %p355
    %p357 = pneg %p356
    // Predicated region
    $region61: #{transformer_encoder_forward.4} parent=5 // pred_check
      _
    $region62: #{transformer_encoder_forward.4} parent=5 // pred_check_branch
      %359 = sbr.rel (%p356) target = $region64
    $region63: #{transformer_encoder_forward.4} parent=5 // pred_region
      %s360 = ssub.s32 %s17, 1
      %p361 = scmp.lt.s32.totalorder %s22, 1
      %s362 = scalar_select %p361, %s22, 1
      %s363 = smul.addr %s362, 2
      %s364 = smul.addr %s363, 8
      %s365 = scalar_lea.vmem %s0, %s364
      %p366 = pneg %p43
      %p367 = pneg %p40
      %p368 = scmp.lt.s32.totalorder %s22, 1
      %s369 = scalar_select %p368, %s22, 1
      %s370 = smul.addr %s369, 2
      %s371 = smul.addr %s370, 8
      %s372 = scalar_lea.vmem %s1, %s371
      %p373 = pneg %p69
      %p374 = pneg %p66
      %p375 = scmp.lt.s32.totalorder %s22, 1
      %s376 = scalar_select %p375, %s22, 1
      %s377 = scalar_lea.vmem %s2, %s376
      %p378 = pneg %p95
      %p379 = pneg %p92
      %p380 = pneg %p116
      %p381 = pneg %p113
      %p382 = pneg %p137
      %p383 = pneg %p134
      %p384 = pneg %p158
      %p385 = pneg %p155
      %p386 = pneg %p179
      %p387 = pneg %p176
      %p388 = pneg %p200
      %p389 = pneg %p197
      %p390 = pneg %p221
      %p391 = pneg %p218
      %p392 = pneg %p242
      %p393 = pneg %p239
      %p394 = pneg %p263
      %p395 = pneg %p260
      %p396 = pneg %p289
      %p397 = pneg %p286
      %p398 = scmp.lt.s32.totalorder %s22, 1
      %s399 = scalar_select %p398, %s22, 1
      %s400 = smul.addr %s399, 2
      %s401 = smul.addr %s400, 8
      %s402 = scalar_lea.vmem %s11, %s401
      %p403 = scmp.lt.s32.totalorder %s22, 1
      %s404 = scalar_select %p403, %s22, 1
      %s405 = smul.addr %s404, 2
      %s406 = smul.addr %s405, 8
      %s407 = scalar_lea.vmem %s0, %s406
      %p408 = scmp.lt.s32.totalorder %s22, 1
      %s409 = scalar_select %p408, %s22, 1
      %s410 = smul.addr %s409, 2
      %s411 = smul.addr %s410, 8
      %s412 = scalar_lea.vmem %s1, %s411
      %p413 = scmp.lt.s32.totalorder %s22, 1
      %s414 = scalar_select %p413, %s22, 1
      %s415 = scalar_lea.vmem %s2, %s414
      %p416 = scmp.lt.s32.totalorder %s22, 1
      %s417 = scalar_select %p416, %s22, 1
      %s418 = smul.addr %s417, 2
      %s419 = smul.addr %s418, 8
      %s420 = scalar_lea.vmem %s11, %s419
      %v422 = vld [vmem:[%s407] sm:$0xff]
      %v423 = vld [vmem:[%s407 + $0x8] sm:$0xff]
      %v424 = vld [vmem:[%s412] sm:$0xff]
      %v425 = vld [vmem:[%s412 + $0x8] sm:$0xff]
      %v426 = vadd.f32 %v422, %v424
      %v427 = vadd.f32 %v423, %v425
      %v428 = vpack.c.bf16 %v427, %v426
      %v429 = vld [vmem:[%s3] sm:$0xf]
      %v430 = vld [vmem:[%s3 + $0x4] sm:$0xf]
      %v431 = vld [vmem:[%s3 + $0x8] sm:$0xf]
      %v432 = vld [vmem:[%s3 + $0xc] sm:$0xf]
      %v433 = vld [vmem:[%s4] sm:$0x1]
      %v435 = vlaneseq
      %v436 = vshrl.u32 %v435, 7
      %v437 = vsub.s32 0, %v436
      %v438 = vrot.slane %v433, %v437
      %v444 = vunpack.c.l.b16 %v429
      %v445 = vunpack.c.l.b16 %v430
      %v446 = vunpack.c.l.b16 %v431
      %v447 = vunpack.c.l.b16 %v432
      %v448 = vpack.c.b16 %v445, %v444
      %v449 = vpack.c.b16 %v447, %v446
      %vm452 = vcmask 261120
      %v454 = vsel %vm452, %v428, 0
      %456 = vmatprep.subr.bf16.mxu0 0
      %457 = vmatpush1.bf16.msra.mxu0 0
      %458 = vmatprep.subr.bf16.mxu0 0
      %459 = vmatpush1.bf16.msra.mxu0 0
      %460 = vmatprep.subr.bf16.mxu0 0
      %461 = vmatpush1.bf16.msra.mxu0 0
      %462 = vmatprep.subr.bf16.mxu0 0
      %463 = vmatpush1.bf16.msra.mxu0 0
      %464 = vmatprep.subr.bf16.mxu0 0
      %465 = vmatpush1.bf16.msra.mxu0 0
      %466 = vmatprep.subr.bf16.mxu0 0
      %467 = vmatpush1.bf16.msra.mxu0 0
      %468 = vmatprep.subr.bf16.mxu0 0
      %469 = vmatpush1.bf16.msra.mxu0 %v449
      %470 = vmatprep.subr.bf16.mxu0 0
      %471 = vmatpush1.bf16.msra.mxu0 %v448
      %472 = vmatprep.subr.bf16.mxu0 0
      %473 = vmatpush2.bf16.msra.mxu0 0
      %474 = vmatprep.subr.bf16.mxu0 0
      %475 = vmatpush2.bf16.msra.mxu0 0
      %476 = vmatprep.subr.bf16.mxu0 0
      %477 = vmatpush2.bf16.msra.mxu0 0
      %478 = vmatprep.subr.bf16.mxu0 0
      %479 = vmatpush2.bf16.msra.mxu0 0
      %480 = vmatprep.subr.bf16.mxu0 0
      %481 = vmatpush2.bf16.msra.mxu0 0
      %482 = vmatprep.subr.bf16.mxu0 0
      %483 = vmatpush2.bf16.msra.mxu0 0
      %484 = vmatprep.subr.bf16.mxu0 0
      %485 = vmatpush2.bf16.msra.mxu0 0
      %486 = vmatprep.subr.bf16.mxu0 0
      %487 = vmatpush2.bf16.msra.mxu0 0
      %488 = vmatprep.mubr.bf16.mxu0 0
      %489 = vmatmul.mubr.bf16.gmra.mxu0 %v454
      %v490 = vpop.f32.mrf.mxu0
      %v491 = vadd.f32 %v438, %v490
      %v492 = vpop.f32.mrf.mxu0
      %v493 = vpop.f32.mrf.mxu0
      %v494 = vadd.f32 %v438, %v493
      %v495 = vpop.f32.mrf.mxu0
      %496 = vdwg.mxu0
      %v497 = vpack.c.bf16 %v423, %v422
      %v498 = vld [vmem:[%s5] sm:$0xf]
      %v499 = vld [vmem:[%s5 + $0x4] sm:$0xf]
      %v500 = vld [vmem:[%s5 + $0x8] sm:$0xf]
      %v501 = vld [vmem:[%s5 + $0xc] sm:$0xf]
      %v502 = vld [vmem:[%s6] sm:$0x1]
      %v504 = vlaneseq
      %v505 = vshrl.u32 %v504, 7
      %v506 = vsub.s32 0, %v505
      %v507 = vrot.slane %v502, %v506
      %v513 = vunpack.c.l.b16 %v498
      %v514 = vunpack.c.l.b16 %v499
      %v515 = vunpack.c.l.b16 %v500
      %v516 = vunpack.c.l.b16 %v501
      %v517 = vpack.c.b16 %v514, %v513
      %v518 = vpack.c.b16 %v516, %v515
      %v522 = vsel %vm452, %v497, 0
      %524 = vmatprep.subr.bf16.mxu0 0
      %525 = vmatpush1.bf16.msra.mxu0 0
      %526 = vmatprep.subr.bf16.mxu0 0
      %527 = vmatpush1.bf16.msra.mxu0 0
      %528 = vmatprep.subr.bf16.mxu0 0
      %529 = vmatpush1.bf16.msra.mxu0 0
      %530 = vmatprep.subr.bf16.mxu0 0
      %531 = vmatpush1.bf16.msra.mxu0 0
      %532 = vmatprep.subr.bf16.mxu0 0
      %533 = vmatpush1.bf16.msra.mxu0 0
      %534 = vmatprep.subr.bf16.mxu0 0
      %535 = vmatpush1.bf16.msra.mxu0 0
      %536 = vmatprep.subr.bf16.mxu0 0
      %537 = vmatpush1.bf16.msra.mxu0 %v518
      %538 = vmatprep.subr.bf16.mxu0 0
      %539 = vmatpush1.bf16.msra.mxu0 %v517
      %540 = vmatprep.subr.bf16.mxu0 0
      %541 = vmatpush2.bf16.msra.mxu0 0
      %542 = vmatprep.subr.bf16.mxu0 0
      %543 = vmatpush2.bf16.msra.mxu0 0
      %544 = vmatprep.subr.bf16.mxu0 0
      %545 = vmatpush2.bf16.msra.mxu0 0
      %546 = vmatprep.subr.bf16.mxu0 0
      %547 = vmatpush2.bf16.msra.mxu0 0
      %548 = vmatprep.subr.bf16.mxu0 0
      %549 = vmatpush2.bf16.msra.mxu0 0
      %550 = vmatprep.subr.bf16.mxu0 0
      %551 = vmatpush2.bf16.msra.mxu0 0
      %552 = vmatprep.subr.bf16.mxu0 0
      %553 = vmatpush2.bf16.msra.mxu0 0
      %554 = vmatprep.subr.bf16.mxu0 0
      %555 = vmatpush2.bf16.msra.mxu0 0
      %556 = vmatprep.mubr.bf16.mxu0 0
      %557 = vmatmul.mubr.bf16.gmra.mxu0 %v522
      %v558 = vpop.f32.mrf.mxu0
      %v559 = vadd.f32 %v507, %v558
      %v560 = vpop.f32.mrf.mxu0
      %v561 = vpop.f32.mrf.mxu0
      %v562 = vadd.f32 %v507, %v561
      %v563 = vpop.f32.mrf.mxu0
      %564 = vdwg.mxu0
      %v565 = vld [vmem:[%s415] sm:$0x1]
      %v566 = vpack.c.bf16 %v494, %v491
      %v567 = vpack.c.bf16 %v562, %v559
      %v569 = vlaneseq
      %v570 = vshrl.u32 %v569, 7
      %v571 = vsub.s32 0, %v570
      %v572 = vrot.slane %v565, %v571
      %575 = vrot.lane.b32.xlu0 %v566, 96
      %v576 = vpop.permute.xlu0 %575
      %vm577 = vcmask 64512
      %v579 = vsel %vm577, %v566, 0
      %v582 = vsel %vm577, %v576, 0
      %584 = vmatprep.subr.bf16.mxu0 0
      %585 = vmatpush1.bf16.xpose.msra.mxu0 0
      %586 = vmatprep.subr.bf16.mxu0 0
      %587 = vmatpush1.bf16.xpose.msra.mxu0 0
      %588 = vmatprep.subr.bf16.mxu0 0
      %589 = vmatpush1.bf16.xpose.msra.mxu0 0
      %590 = vmatprep.subr.bf16.mxu0 0
      %591 = vmatpush1.bf16.xpose.msra.mxu0 0
      %592 = vmatprep.subr.bf16.mxu0 0
      %593 = vmatpush1.bf16.xpose.msra.mxu0 0
      %594 = vmatprep.subr.bf16.mxu0 0
      %595 = vmatpush1.bf16.xpose.msra.mxu0 0
      %596 = vmatprep.subr.bf16.mxu0 0
      %597 = vmatpush1.bf16.xpose.msra.mxu0 0
      %598 = vmatprep.subr.bf16.mxu0 0
      %599 = vmatpush1.bf16.xpose.msra.mxu0 %v582
      %600 = vmatprep.subr.bf16.mxu0 0
      %601 = vmatpush2.bf16.xpose.msra.mxu0 0
      %602 = vmatprep.subr.bf16.mxu0 0
      %603 = vmatpush2.bf16.xpose.msra.mxu0 0
      %604 = vmatprep.subr.bf16.mxu0 0
      %605 = vmatpush2.bf16.xpose.msra.mxu0 0
      %606 = vmatprep.subr.bf16.mxu0 0
      %607 = vmatpush2.bf16.xpose.msra.mxu0 0
      %608 = vmatprep.subr.bf16.mxu0 0
      %609 = vmatpush2.bf16.xpose.msra.mxu0 0
      %610 = vmatprep.subr.bf16.mxu0 0
      %611 = vmatpush2.bf16.xpose.msra.mxu0 0
      %612 = vmatprep.subr.bf16.mxu0 0
      %613 = vmatpush2.bf16.xpose.msra.mxu0 0
      %614 = vmatprep.subr.bf16.mxu0 0
      %615 = vmatpush2.bf16.xpose.msra.mxu0 0
      %616 = vmatprep.mubr.bf16.mxu0 0
      %617 = vmatmul.mubr.bf16.gmra.mxu0 %v579
      %v618 = vpop.f32.mrf.mxu0
      %v619 = vadd.f32 %v572, %v618
      %v620 = vpop.f32.mrf.mxu0
      %v621 = vpop.f32.mrf.mxu0
      %v622 = vadd.f32 %v572, %v621
      %v623 = vpop.f32.mrf.mxu0
      %624 = vdwg.mxu0
      %vm625 = vcmask 130048
      %v626 = vsel %vm625, %v619, -inf
      %627 = vmax.xlane.f32.xlu0 %v626
      %v628 = vpop.xlane.xlu0 %627
      %v629 = vsel %vm625, %v622, -inf
      %630 = vmax.xlane.f32.xlu0 %v629
      %v631 = vpop.xlane.xlu0 %630
      %v632 = vsub.f32 %v619, %v628
      %v633 = vsub.f32 %v622, %v631
      %v634 = vmul.f32 %v632, 1.442695
      %v635 = vpow.pop %v634
      %v636 = vmul.f32 %v633, 1.442695
      %v637 = vpow.pop %v636
      %v638 = vsel %vm625, %v635, 0.0
      %639 = vadd.xlane.f32.xlu0 %v638
      %v640 = vpop.xlane.xlu0 %639
      %v641 = vsel %vm625, %v637, 0.0
      %642 = vadd.xlane.f32.xlu0 %v641
      %v643 = vpop.xlane.xlu0 %642
      %v644 = vrcp.pop %v640
      %v645 = vrcp.pop %v643
      %v646 = vmul.f32 %v635, %v644
      %v647 = vmul.f32 %v637, %v645
      %v648 = vpack.c.bf16 %v647, %v646
      %v650 = vsel %vm625, %v648, 0
      %652 = vmatprep.subr.bf16.mxu0 0
      %653 = vmatpush1.bf16.msra.mxu0 0
      %654 = vmatprep.subr.bf16.mxu0 0
      %655 = vmatpush1.bf16.msra.mxu0 0
      %656 = vmatprep.subr.bf16.mxu0 0
      %657 = vmatpush1.bf16.msra.mxu0 0
      %658 = vmatprep.subr.bf16.mxu0 0
      %659 = vmatpush1.bf16.msra.mxu0 0
      %660 = vmatprep.subr.bf16.mxu0 0
      %661 = vmatpush1.bf16.msra.mxu0 0
      %662 = vmatprep.subr.bf16.mxu0 0
      %663 = vmatpush1.bf16.msra.mxu0 0
      %664 = vmatprep.subr.bf16.mxu0 0
      %665 = vmatpush1.bf16.msra.mxu0 0
      %666 = vmatprep.subr.bf16.mxu0 0
      %667 = vmatpush1.bf16.msra.mxu0 %v567
      %668 = vmatprep.subr.bf16.mxu0 0
      %669 = vmatpush2.bf16.msra.mxu0 0
      %670 = vmatprep.subr.bf16.mxu0 0
      %671 = vmatpush2.bf16.msra.mxu0 0
      %672 = vmatprep.subr.bf16.mxu0 0
      %673 = vmatpush2.bf16.msra.mxu0 0
      %674 = vmatprep.subr.bf16.mxu0 0
      %675 = vmatpush2.bf16.msra.mxu0 0
      %676 = vmatprep.subr.bf16.mxu0 0
      %677 = vmatpush2.bf16.msra.mxu0 0
      %678 = vmatprep.subr.bf16.mxu0 0
      %679 = vmatpush2.bf16.msra.mxu0 0
      %680 = vmatprep.subr.bf16.mxu0 0
      %681 = vmatpush2.bf16.msra.mxu0 0
      %682 = vmatprep.subr.bf16.mxu0 0
      %683 = vmatpush2.bf16.msra.mxu0 0
      %684 = vmatprep.mubr.bf16.mxu0 0
      %685 = vmatmul.mubr.bf16.gmra.mxu0 %v650
      %v686 = vpop.f32.mrf.mxu0
      %v687 = vadd.f32 0.0, %v686
      %v688 = vpop.f32.mrf.mxu0
      %v689 = vpop.f32.mrf.mxu0
      %v690 = vadd.f32 0.0, %v689
      %v691 = vpop.f32.mrf.mxu0
      %692 = vdwg.mxu0
      %693 = vrot.lane.b32.xlu0 %v566, 120
      %v694 = vpop.permute.xlu0 %693
      %695 = vrot.lane.b32.xlu0 %v566, 88
      %v696 = vpop.permute.xlu0 %695
      %v698 = vsel %vm577, %v694, 0
      %v701 = vsel %vm577, %v696, 0
      %703 = vmatprep.subr.bf16.mxu0 0
      %704 = vmatpush1.bf16.xpose.msra.mxu0 0
      %705 = vmatprep.subr.bf16.mxu0 0
      %706 = vmatpush1.bf16.xpose.msra.mxu0 0
      %707 = vmatprep.subr.bf16.mxu0 0
      %708 = vmatpush1.bf16.xpose.msra.mxu0 0
      %709 = vmatprep.subr.bf16.mxu0 0
      %710 = vmatpush1.bf16.xpose.msra.mxu0 0
      %711 = vmatprep.subr.bf16.mxu0 0
      %712 = vmatpush1.bf16.xpose.msra.mxu0 0
      %713 = vmatprep.subr.bf16.mxu0 0
      %714 = vmatpush1.bf16.xpose.msra.mxu0 0
      %715 = vmatprep.subr.bf16.mxu0 0
      %716 = vmatpush1.bf16.xpose.msra.mxu0 0
      %717 = vmatprep.subr.bf16.mxu0 0
      %718 = vmatpush1.bf16.xpose.msra.mxu0 %v701
      %719 = vmatprep.subr.bf16.mxu0 0
      %720 = vmatpush2.bf16.xpose.msra.mxu0 0
      %721 = vmatprep.subr.bf16.mxu0 0
      %722 = vmatpush2.bf16.xpose.msra.mxu0 0
      %723 = vmatprep.subr.bf16.mxu0 0
      %724 = vmatpush2.bf16.xpose.msra.mxu0 0
      %725 = vmatprep.subr.bf16.mxu0 0
      %726 = vmatpush2.bf16.xpose.msra.mxu0 0
      %727 = vmatprep.subr.bf16.mxu0 0
      %728 = vmatpush2.bf16.xpose.msra.mxu0 0
      %729 = vmatprep.subr.bf16.mxu0 0
      %730 = vmatpush2.bf16.xpose.msra.mxu0 0
      %731 = vmatprep.subr.bf16.mxu0 0
      %732 = vmatpush2.bf16.xpose.msra.mxu0 0
      %733 = vmatprep.subr.bf16.mxu0 0
      %734 = vmatpush2.bf16.xpose.msra.mxu0 0
      %735 = vmatprep.mubr.bf16.mxu0 0
      %736 = vmatmul.mubr.bf16.gmra.mxu0 %v698
      %v737 = vpop.f32.mrf.mxu0
      %v738 = vadd.f32 %v572, %v737
      %v739 = vpop.f32.mrf.mxu0
      %v740 = vpop.f32.mrf.mxu0
      %v741 = vadd.f32 %v572, %v740
      %v742 = vpop.f32.mrf.mxu0
      %743 = vdwg.mxu0
      %v744 = vsel %vm625, %v738, -inf
      %745 = vmax.xlane.f32.xlu0 %v744
      %v746 = vpop.xlane.xlu0 %745
      %v747 = vsel %vm625, %v741, -inf
      %748 = vmax.xlane.f32.xlu0 %v747
      %v749 = vpop.xlane.xlu0 %748
      %v750 = vsub.f32 %v738, %v746
      %v751 = vsub.f32 %v741, %v749
      %v752 = vmul.f32 %v750, 1.442695
      %v753 = vpow.pop %v752
      %v754 = vmul.f32 %v751, 1.442695
      %v755 = vpow.pop %v754
      %v756 = vsel %vm625, %v753, 0.0
      %757 = vadd.xlane.f32.xlu0 %v756
      %v758 = vpop.xlane.xlu0 %757
      %v759 = vsel %vm625, %v755, 0.0
      %760 = vadd.xlane.f32.xlu0 %v759
      %v761 = vpop.xlane.xlu0 %760
      %v762 = vrcp.pop %v758
      %v763 = vrcp.pop %v761
      %v764 = vmul.f32 %v753, %v762
      %v765 = vmul.f32 %v755, %v763
      %v766 = vpack.c.bf16 %v765, %v764
      %768 = vrot.lane.b32.xlu0 %v567, 120
      %v769 = vpop.permute.xlu0 %768
      %v772 = vsel %vm625, %v766, 0
      %774 = vmatprep.subr.bf16.mxu0 0
      %775 = vmatpush1.bf16.msra.mxu0 0
      %776 = vmatprep.subr.bf16.mxu0 0
      %777 = vmatpush1.bf16.msra.mxu0 0
      %778 = vmatprep.subr.bf16.mxu0 0
      %779 = vmatpush1.bf16.msra.mxu0 0
      %780 = vmatprep.subr.bf16.mxu0 0
      %781 = vmatpush1.bf16.msra.mxu0 0
      %782 = vmatprep.subr.bf16.mxu0 0
      %783 = vmatpush1.bf16.msra.mxu0 0
      %784 = vmatprep.subr.bf16.mxu0 0
      %785 = vmatpush1.bf16.msra.mxu0 0
      %786 = vmatprep.subr.bf16.mxu0 0
      %787 = vmatpush1.bf16.msra.mxu0 0
      %788 = vmatprep.subr.bf16.mxu0 0
      %789 = vmatpush1.bf16.msra.mxu0 %v769
      %790 = vmatprep.subr.bf16.mxu0 0
      %791 = vmatpush2.bf16.msra.mxu0 0
      %792 = vmatprep.subr.bf16.mxu0 0
      %793 = vmatpush2.bf16.msra.mxu0 0
      %794 = vmatprep.subr.bf16.mxu0 0
      %795 = vmatpush2.bf16.msra.mxu0 0
      %796 = vmatprep.subr.bf16.mxu0 0
      %797 = vmatpush2.bf16.msra.mxu0 0
      %798 = vmatprep.subr.bf16.mxu0 0
      %799 = vmatpush2.bf16.msra.mxu0 0
      %800 = vmatprep.subr.bf16.mxu0 0
      %801 = vmatpush2.bf16.msra.mxu0 0
      %802 = vmatprep.subr.bf16.mxu0 0
      %803 = vmatpush2.bf16.msra.mxu0 0
      %804 = vmatprep.subr.bf16.mxu0 0
      %805 = vmatpush2.bf16.msra.mxu0 0
      %806 = vmatprep.mubr.bf16.mxu0 0
      %807 = vmatmul.mubr.bf16.gmra.mxu0 %v772
      %v808 = vpop.f32.mrf.mxu0
      %v809 = vadd.f32 0.0, %v808
      %v810 = vpop.f32.mrf.mxu0
      %v811 = vpop.f32.mrf.mxu0
      %v812 = vadd.f32 0.0, %v811
      %v813 = vpop.f32.mrf.mxu0
      %814 = vdwg.mxu0
      %815 = vrot.lane.b32.xlu0 %v566, 112
      %v816 = vpop.permute.xlu0 %815
      %817 = vrot.lane.b32.xlu0 %v566, 80
      %v818 = vpop.permute.xlu0 %817
      %v820 = vsel %vm577, %v816, 0
      %v823 = vsel %vm577, %v818, 0
      %825 = vmatprep.subr.bf16.mxu0 0
      %826 = vmatpush1.bf16.xpose.msra.mxu0 0
      %827 = vmatprep.subr.bf16.mxu0 0
      %828 = vmatpush1.bf16.xpose.msra.mxu0 0
      %829 = vmatprep.subr.bf16.mxu0 0
      %830 = vmatpush1.bf16.xpose.msra.mxu0 0
      %831 = vmatprep.subr.bf16.mxu0 0
      %832 = vmatpush1.bf16.xpose.msra.mxu0 0
      %833 = vmatprep.subr.bf16.mxu0 0
      %834 = vmatpush1.bf16.xpose.msra.mxu0 0
      %835 = vmatprep.subr.bf16.mxu0 0
      %836 = vmatpush1.bf16.xpose.msra.mxu0 0
      %837 = vmatprep.subr.bf16.mxu0 0
      %838 = vmatpush1.bf16.xpose.msra.mxu0 0
      %839 = vmatprep.subr.bf16.mxu0 0
      %840 = vmatpush1.bf16.xpose.msra.mxu0 %v823
      %841 = vmatprep.subr.bf16.mxu0 0
      %842 = vmatpush2.bf16.xpose.msra.mxu0 0
      %843 = vmatprep.subr.bf16.mxu0 0
      %844 = vmatpush2.bf16.xpose.msra.mxu0 0
      %845 = vmatprep.subr.bf16.mxu0 0
      %846 = vmatpush2.bf16.xpose.msra.mxu0 0
      %847 = vmatprep.subr.bf16.mxu0 0
      %848 = vmatpush2.bf16.xpose.msra.mxu0 0
      %849 = vmatprep.subr.bf16.mxu0 0
      %850 = vmatpush2.bf16.xpose.msra.mxu0 0
      %851 = vmatprep.subr.bf16.mxu0 0
      %852 = vmatpush2.bf16.xpose.msra.mxu0 0
      %853 = vmatprep.subr.bf16.mxu0 0
      %854 = vmatpush2.bf16.xpose.msra.mxu0 0
      %855 = vmatprep.subr.bf16.mxu0 0
      %856 = vmatpush2.bf16.xpose.msra.mxu0 0
      %857 = vmatprep.mubr.bf16.mxu0 0
      %858 = vmatmul.mubr.bf16.gmra.mxu0 %v820
      %v859 = vpop.f32.mrf.mxu0
      %v860 = vadd.f32 %v572, %v859
      %v861 = vpop.f32.mrf.mxu0
      %v862 = vpop.f32.mrf.mxu0
      %v863 = vadd.f32 %v572, %v862
      %v864 = vpop.f32.mrf.mxu0
      %865 = vdwg.mxu0
      %v866 = vsel %vm625, %v860, -inf
      %867 = vmax.xlane.f32.xlu0 %v866
      %v868 = vpop.xlane.xlu0 %867
      %v869 = vsel %vm625, %v863, -inf
      %870 = vmax.xlane.f32.xlu0 %v869
      %v871 = vpop.xlane.xlu0 %870
      %v872 = vsub.f32 %v860, %v868
      %v873 = vsub.f32 %v863, %v871
      %v874 = vmul.f32 %v872, 1.442695
      %v875 = vpow.pop %v874
      %v876 = vmul.f32 %v873, 1.442695
      %v877 = vpow.pop %v876
      %v878 = vsel %vm625, %v875, 0.0
      %879 = vadd.xlane.f32.xlu0 %v878
      %v880 = vpop.xlane.xlu0 %879
      %v881 = vsel %vm625, %v877, 0.0
      %882 = vadd.xlane.f32.xlu0 %v881
      %v883 = vpop.xlane.xlu0 %882
      %v884 = vrcp.pop %v880
      %v885 = vrcp.pop %v883
      %v886 = vmul.f32 %v875, %v884
      %v887 = vmul.f32 %v877, %v885
      %v888 = vpack.c.bf16 %v887, %v886
      %889 = vrot.lane.b32.xlu0 %v567, 112
      %v890 = vpop.permute.xlu0 %889
      %v893 = vsel %vm625, %v888, 0
      %895 = vmatprep.subr.bf16.mxu0 0
      %896 = vmatpush1.bf16.msra.mxu0 0
      %897 = vmatprep.subr.bf16.mxu0 0
      %898 = vmatpush1.bf16.msra.mxu0 0
      %899 = vmatprep.subr.bf16.mxu0 0
      %900 = vmatpush1.bf16.msra.mxu0 0
      %901 = vmatprep.subr.bf16.mxu0 0
      %902 = vmatpush1.bf16.msra.mxu0 0
      %903 = vmatprep.subr.bf16.mxu0 0
      %904 = vmatpush1.bf16.msra.mxu0 0
      %905 = vmatprep.subr.bf16.mxu0 0
      %906 = vmatpush1.bf16.msra.mxu0 0
      %907 = vmatprep.subr.bf16.mxu0 0
      %908 = vmatpush1.bf16.msra.mxu0 0
      %909 = vmatprep.subr.bf16.mxu0 0
      %910 = vmatpush1.bf16.msra.mxu0 %v890
      %911 = vmatprep.subr.bf16.mxu0 0
      %912 = vmatpush2.bf16.msra.mxu0 0
      %913 = vmatprep.subr.bf16.mxu0 0
      %914 = vmatpush2.bf16.msra.mxu0 0
      %915 = vmatprep.subr.bf16.mxu0 0
      %916 = vmatpush2.bf16.msra.mxu0 0
      %917 = vmatprep.subr.bf16.mxu0 0
      %918 = vmatpush2.bf16.msra.mxu0 0
      %919 = vmatprep.subr.bf16.mxu0 0
      %920 = vmatpush2.bf16.msra.mxu0 0
      %921 = vmatprep.subr.bf16.mxu0 0
      %922 = vmatpush2.bf16.msra.mxu0 0
      %923 = vmatprep.subr.bf16.mxu0 0
      %924 = vmatpush2.bf16.msra.mxu0 0
      %925 = vmatprep.subr.bf16.mxu0 0
      %926 = vmatpush2.bf16.msra.mxu0 0
      %927 = vmatprep.mubr.bf16.mxu0 0
      %928 = vmatmul.mubr.bf16.gmra.mxu0 %v893
      %v929 = vpop.f32.mrf.mxu0
      %v930 = vadd.f32 0.0, %v929
      %v931 = vpop.f32.mrf.mxu0
      %v932 = vpop.f32.mrf.mxu0
      %v933 = vadd.f32 0.0, %v932
      %v934 = vpop.f32.mrf.mxu0
      %935 = vdwg.mxu0
      %936 = vrot.lane.b32.xlu0 %v566, 104
      %v937 = vpop.permute.xlu0 %936
      %938 = vrot.lane.b32.xlu0 %v566, 72
      %v939 = vpop.permute.xlu0 %938
      %v941 = vsel %vm577, %v937, 0
      %v944 = vsel %vm577, %v939, 0
      %946 = vmatprep.subr.bf16.mxu0 0
      %947 = vmatpush1.bf16.xpose.msra.mxu0 0
      %948 = vmatprep.subr.bf16.mxu0 0
      %949 = vmatpush1.bf16.xpose.msra.mxu0 0
      %950 = vmatprep.subr.bf16.mxu0 0
      %951 = vmatpush1.bf16.xpose.msra.mxu0 0
      %952 = vmatprep.subr.bf16.mxu0 0
      %953 = vmatpush1.bf16.xpose.msra.mxu0 0
      %954 = vmatprep.subr.bf16.mxu0 0
      %955 = vmatpush1.bf16.xpose.msra.mxu0 0
      %956 = vmatprep.subr.bf16.mxu0 0
      %957 = vmatpush1.bf16.xpose.msra.mxu0 0
      %958 = vmatprep.subr.bf16.mxu0 0
      %959 = vmatpush1.bf16.xpose.msra.mxu0 0
      %960 = vmatprep.subr.bf16.mxu0 0
      %961 = vmatpush1.bf16.xpose.msra.mxu0 %v944
      %962 = vmatprep.subr.bf16.mxu0 0
      %963 = vmatpush2.bf16.xpose.msra.mxu0 0
      %964 = vmatprep.subr.bf16.mxu0 0
      %965 = vmatpush2.bf16.xpose.msra.mxu0 0
      %966 = vmatprep.subr.bf16.mxu0 0
      %967 = vmatpush2.bf16.xpose.msra.mxu0 0
      %968 = vmatprep.subr.bf16.mxu0 0
      %969 = vmatpush2.bf16.xpose.msra.mxu0 0
      %970 = vmatprep.subr.bf16.mxu0 0
      %971 = vmatpush2.bf16.xpose.msra.mxu0 0
      %972 = vmatprep.subr.bf16.mxu0 0
      %973 = vmatpush2.bf16.xpose.msra.mxu0 0
      %974 = vmatprep.subr.bf16.mxu0 0
      %975 = vmatpush2.bf16.xpose.msra.mxu0 0
      %976 = vmatprep.subr.bf16.mxu0 0
      %977 = vmatpush2.bf16.xpose.msra.mxu0 0
      %978 = vmatprep.mubr.bf16.mxu0 0
      %979 = vmatmul.mubr.bf16.gmra.mxu0 %v941
      %v980 = vpop.f32.mrf.mxu0
      %v981 = vadd.f32 %v572, %v980
      %v982 = vpop.f32.mrf.mxu0
      %v983 = vpop.f32.mrf.mxu0
      %v984 = vadd.f32 %v572, %v983
      %v985 = vpop.f32.mrf.mxu0
      %986 = vdwg.mxu0
      %v987 = vsel %vm625, %v981, -inf
      %988 = vmax.xlane.f32.xlu0 %v987
      %v989 = vpop.xlane.xlu0 %988
      %v990 = vsel %vm625, %v984, -inf
      %991 = vmax.xlane.f32.xlu0 %v990
      %v992 = vpop.xlane.xlu0 %991
      %v993 = vsub.f32 %v981, %v989
      %v994 = vsub.f32 %v984, %v992
      %v995 = vmul.f32 %v993, 1.442695
      %v996 = vpow.pop %v995
      %v997 = vmul.f32 %v994, 1.442695
      %v998 = vpow.pop %v997
      %v999 = vsel %vm625, %v996, 0.0
      %1000 = vadd.xlane.f32.xlu0 %v999
      %v1001 = vpop.xlane.xlu0 %1000
      %v1002 = vsel %vm625, %v998, 0.0
      %1003 = vadd.xlane.f32.xlu0 %v1002
      %v1004 = vpop.xlane.xlu0 %1003
      %v1005 = vrcp.pop %v1001
      %v1006 = vrcp.pop %v1004
      %v1007 = vmul.f32 %v996, %v1005
      %v1008 = vmul.f32 %v998, %v1006
      %v1009 = vpack.c.bf16 %v1008, %v1007
      %1010 = vrot.lane.b32.xlu0 %v567, 104
      %v1011 = vpop.permute.xlu0 %1010
      %v1014 = vsel %vm625, %v1009, 0
      %1016 = vmatprep.subr.bf16.mxu0 0
      %1017 = vmatpush1.bf16.msra.mxu0 0
      %1018 = vmatprep.subr.bf16.mxu0 0
      %1019 = vmatpush1.bf16.msra.mxu0 0
      %1020 = vmatprep.subr.bf16.mxu0 0
      %1021 = vmatpush1.bf16.msra.mxu0 0
      %1022 = vmatprep.subr.bf16.mxu0 0
      %1023 = vmatpush1.bf16.msra.mxu0 0
      %1024 = vmatprep.subr.bf16.mxu0 0
      %1025 = vmatpush1.bf16.msra.mxu0 0
      %1026 = vmatprep.subr.bf16.mxu0 0
      %1027 = vmatpush1.bf16.msra.mxu0 0
      %1028 = vmatprep.subr.bf16.mxu0 0
      %1029 = vmatpush1.bf16.msra.mxu0 0
      %1030 = vmatprep.subr.bf16.mxu0 0
      %1031 = vmatpush1.bf16.msra.mxu0 %v1011
      %1032 = vmatprep.subr.bf16.mxu0 0
      %1033 = vmatpush2.bf16.msra.mxu0 0
      %1034 = vmatprep.subr.bf16.mxu0 0
      %1035 = vmatpush2.bf16.msra.mxu0 0
      %1036 = vmatprep.subr.bf16.mxu0 0
      %1037 = vmatpush2.bf16.msra.mxu0 0
      %1038 = vmatprep.subr.bf16.mxu0 0
      %1039 = vmatpush2.bf16.msra.mxu0 0
      %1040 = vmatprep.subr.bf16.mxu0 0
      %1041 = vmatpush2.bf16.msra.mxu0 0
      %1042 = vmatprep.subr.bf16.mxu0 0
      %1043 = vmatpush2.bf16.msra.mxu0 0
      %1044 = vmatprep.subr.bf16.mxu0 0
      %1045 = vmatpush2.bf16.msra.mxu0 0
      %1046 = vmatprep.subr.bf16.mxu0 0
      %1047 = vmatpush2.bf16.msra.mxu0 0
      %1048 = vmatprep.mubr.bf16.mxu0 0
      %1049 = vmatmul.mubr.bf16.gmra.mxu0 %v1014
      %v1050 = vpop.f32.mrf.mxu0
      %v1051 = vadd.f32 0.0, %v1050
      %v1052 = vpop.f32.mrf.mxu0
      %v1053 = vpop.f32.mrf.mxu0
      %v1054 = vadd.f32 0.0, %v1053
      %v1055 = vpop.f32.mrf.mxu0
      %1056 = vdwg.mxu0
      %1059 = vrot.lane.b32.xlu0 %v809, 8
      %v1060 = vpop.permute.xlu0 %1059
      %1061 = vrot.lane.b32.xlu0 %v812, 8
      %v1062 = vpop.permute.xlu0 %1061
      %1067 = vrot.lane.b32.xlu0 %v930, 16
      %v1068 = vpop.permute.xlu0 %1067
      %1069 = vrot.lane.b32.xlu0 %v933, 16
      %v1070 = vpop.permute.xlu0 %1069
      %1075 = vrot.lane.b32.xlu0 %v1051, 24
      %v1076 = vpop.permute.xlu0 %1075
      %1077 = vrot.lane.b32.xlu0 %v1054, 24
      %v1078 = vpop.permute.xlu0 %1077
      %v1081 = vsel %vm577, %v687, %v1060
      %v1082 = vsel %vm577, %v690, %v1062
      %v1083 = vsel %vm625, %v1081, %v1068
      %v1084 = vsel %vm625, %v1082, %v1070
      %vm1085 = vcmask 195584
      %v1086 = vsel %vm1085, %v1083, %v1076
      %v1087 = vsel %vm1085, %v1084, %v1078
      %v1088 = vpack.c.bf16 %v1087, %v1086
      %v1089 = vld [vmem:[%s7] sm:$0xf]
      %v1090 = vld [vmem:[%s7 + $0x4] sm:$0xf]
      %v1091 = vld [vmem:[%s7 + $0x8] sm:$0xf]
      %v1092 = vld [vmem:[%s7 + $0xc] sm:$0xf]
      %v1093 = vld [vmem:[%s8] sm:$0x1]
      %v1095 = vlaneseq
      %v1096 = vshrl.u32 %v1095, 7
      %v1097 = vsub.s32 0, %v1096
      %v1098 = vrot.slane %v1093, %v1097
      %v1104 = vunpack.c.l.b16 %v1089
      %v1105 = vunpack.c.l.b16 %v1090
      %v1106 = vunpack.c.l.b16 %v1091
      %v1107 = vunpack.c.l.b16 %v1092
      %v1108 = vpack.c.b16 %v1105, %v1104
      %v1109 = vpack.c.b16 %v1107, %v1106
      %v1113 = vsel %vm452, %v1088, 0
      %1115 = vmatprep.subr.bf16.mxu0 0
      %1116 = vmatpush1.bf16.msra.mxu0 0
      %1117 = vmatprep.subr.bf16.mxu0 0
      %1118 = vmatpush1.bf16.msra.mxu0 0
      %1119 = vmatprep.subr.bf16.mxu0 0
      %1120 = vmatpush1.bf16.msra.mxu0 0
      %1121 = vmatprep.subr.bf16.mxu0 0
      %1122 = vmatpush1.bf16.msra.mxu0 0
      %1123 = vmatprep.subr.bf16.mxu0 0
      %1124 = vmatpush1.bf16.msra.mxu0 0
      %1125 = vmatprep.subr.bf16.mxu0 0
      %1126 = vmatpush1.bf16.msra.mxu0 0
      %1127 = vmatprep.subr.bf16.mxu0 0
      %1128 = vmatpush1.bf16.msra.mxu0 %v1109
      %1129 = vmatprep.subr.bf16.mxu0 0
      %1130 = vmatpush1.bf16.msra.mxu0 %v1108
      %1131 = vmatprep.subr.bf16.mxu0 0
      %1132 = vmatpush2.bf16.msra.mxu0 0
      %1133 = vmatprep.subr.bf16.mxu0 0
      %1134 = vmatpush2.bf16.msra.mxu0 0
      %1135 = vmatprep.subr.bf16.mxu0 0
      %1136 = vmatpush2.bf16.msra.mxu0 0
      %1137 = vmatprep.subr.bf16.mxu0 0
      %1138 = vmatpush2.bf16.msra.mxu0 0
      %1139 = vmatprep.subr.bf16.mxu0 0
      %1140 = vmatpush2.bf16.msra.mxu0 0
      %1141 = vmatprep.subr.bf16.mxu0 0
      %1142 = vmatpush2.bf16.msra.mxu0 0
      %1143 = vmatprep.subr.bf16.mxu0 0
      %1144 = vmatpush2.bf16.msra.mxu0 0
      %1145 = vmatprep.subr.bf16.mxu0 0
      %1146 = vmatpush2.bf16.msra.mxu0 0
      %1147 = vmatprep.mubr.bf16.mxu0 0
      %1148 = vmatmul.mubr.bf16.gmra.mxu0 %v1113
      %v1149 = vpop.f32.mrf.mxu0
      %v1150 = vadd.f32 %v1098, %v1149
      %v1151 = vpop.f32.mrf.mxu0
      %v1152 = vpop.f32.mrf.mxu0
      %v1153 = vadd.f32 %v1098, %v1152
      %v1154 = vpop.f32.mrf.mxu0
      %1155 = vdwg.mxu0
      %v1156 = vadd.f32 %v422, %v1150
      %v1157 = vadd.f32 %v423, %v1153
      %v1158 = vld [vmem:[%s9] sm:$0x1]
      %v1159 = vld [vmem:[%s10] sm:$0x1]
      %v1160 = vsel %vm452, %v1156, 0.0
      %1161 = vadd.xlane.f32.xlu0 %v1160
      %v1162 = vpop.xlane.xlu0 %1161
      %v1163 = vsel %vm452, %v1157, 0.0
      %1164 = vadd.xlane.f32.xlu0 %v1163
      %v1165 = vpop.xlane.xlu0 %1164
      %v1166 = vrcp.pop 32.0
      %v1167 = vmul.f32 %v1162, %v1166
      %v1168 = vmul.f32 %v1165, %v1166
      %v1169 = vsub.f32 %v1156, %v1167
      %v1170 = vsub.f32 %v1157, %v1168
      %v1171 = vmul.f32 %v1169, %v1169
      %v1172 = vmul.f32 %v1170, %v1170
      %v1173 = vsel %vm452, %v1171, 0.0
      %1174 = vadd.xlane.f32.xlu0 %v1173
      %v1175 = vpop.xlane.xlu0 %1174
      %v1176 = vsel %vm452, %v1172, 0.0
      %1177 = vadd.xlane.f32.xlu0 %v1176
      %v1178 = vpop.xlane.xlu0 %1177
      %v1179 = vmul.f32 %v1175, %v1166
      %v1180 = vmul.f32 %v1178, %v1166
      %v1181 = vadd.f32 %v1179, 1e-05
      %v1182 = vadd.f32 %v1180, 1e-05
      %v1183 = vrsqrt.pop %v1181
      %v1184 = vrsqrt.pop %v1182
      %v1185 = vmul.f32 %v1169, %v1183
      %v1186 = vmul.f32 %v1170, %v1184
      %v1188 = vlaneseq
      %v1189 = vshrl.u32 %v1188, 7
      %v1190 = vsub.s32 0, %v1189
      %v1191 = vrot.slane %v1158, %v1190
      %v1193 = vmul.f32 %v1185, %v1191
      %v1194 = vmul.f32 %v1186, %v1191
      %v1196 = vlaneseq
      %v1197 = vshrl.u32 %v1196, 7
      %v1198 = vsub.s32 0, %v1197
      %v1199 = vrot.slane %v1159, %v1198
      %v1201 = vadd.f32 %v1193, %v1199
      %v1202 = vadd.f32 %v1194, %v1199
      %1203 = vst.msk [vmem:[%s420] sm:$0xff] %vm452, %v1201
      %1204 = vst.msk [vmem:[%s420 + $0x8] sm:$0xff] %vm452, %v1202
      %p1205 = scmp.lt.s32.totalorder %s22, 1
      %s1206 = scalar_select %p1205, %s22, 1
      %s1207 = smul.addr %s1206, 2
      %s1208 = smul.addr %s1207, 8
      %s1209 = scalar_lea.vmem %s11, %s1208
      // Predicated region
      $region65: #{transformer_encoder_forward.4} parent=63 // pred_check
        %p1210 = pneg %p286
      $region66: #{transformer_encoder_forward.4} parent=63 // pred_check_branch
        %1212 = sbr.rel (%p1210) target = $region68
      $region67: #{transformer_encoder_forward.4} parent=63 // pred_region
        _
      $region68: #{transformer_encoder_forward.4} parent=63 // pred_fallthru
        _
    $region64: #{transformer_encoder_forward.4} parent=5 // pred_fallthru
      _
    %p1213 = scmp.le.s32.totalorder 2, %s17
    // Predicated region
    $region69: #{transformer_encoder_forward.4} parent=5 // pred_check
      %p1214 = pneg %p1213
    $region70: #{transformer_encoder_forward.4} parent=5 // pred_check_branch
      %1216 = sbr.rel (%p1214) target = $region72
    $region71: #{transformer_encoder_forward.4} parent=5 // pred_region
      %s1217 = ssub.s32 %s17, 2
      // Predicated region
      $region73: #{transformer_encoder_forward.4} parent=71 // pred_check
        %p1218 = pneg %p292
      $region74: #{transformer_encoder_forward.4} parent=71 // pred_check_branch
        %1220 = sbr.rel (%p1218) target = $region76
      $region75: #{transformer_encoder_forward.4} parent=71 // pred_region
        %p1221 = scmp.lt.s32.totalorder %s23, 1
        %s1222 = scalar_select %p1221, %s23, 1
        %s1223 = smul.addr %s1222, 2
        %s1224 = smul.addr %s1223, 8
        %s1225 = scalar_lea.vmem %s11, %s1224
      $region76: #{transformer_encoder_forward.4} parent=71 // pred_fallthru
        _
    $region72: #{transformer_encoder_forward.4} parent=5 // pred_fallthru
      _
  $region6: #{transformer_encoder_forward.4} parent=0 // loop_footer
    %s21 = sadd.s32 1, %s17
  $region7: #{transformer_encoder_forward.4} parent=0 // loop_footer_branch
    %16 = sbr.rel target = $region3
  $region8: #{transformer_encoder_forward.4} parent=0 // loop_exit
    _

</llo_original>
